<compile_context>
chip_gen: v5e
topology: v5e:2x2
jax: 0.10.0
libtpu: 0.0.40
codegen_flags: <defaults>
</compile_context>

<pallas_src>
import functools

import jax
import jax.numpy as jnp
from jax import lax
from jax.experimental import pallas as pl
from jax.experimental.pallas import tpu as pltpu


# -----------------------------------------------------------------------------
# Kernel 1: fused theta/phi/g 1x1 projection + 2x2 max pool (channels-first).
# -----------------------------------------------------------------------------
def _proj_pool_kernel(x_ref, w_ref, b_ref, th_ref, ph_ref, g_ref, *, w_img, mxu_dtype):
    # x_ref : (1, C, THW)    f32   TH image rows, channels-first, lanes = flat spatial
    # w_ref : (Ctot, C)      mxu   fused [w_theta; w_phi; w_g] (out-channel major)
    # b_ref : (Ctot, 1)      f32
    # th_ref: (1, C8, THW)   full-resolution theta, channels-first
    # ph_ref: (1, TPP, C8)   2x2 max-pooled phi, channels-last
    # g_ref : (1, C2, TPP)   2x2 max-pooled g, channels-first
    c8 = th_ref.shape[1]
    x = x_ref[0].astype(mxu_dtype)                               # (C, THW)
    y = jnp.dot(w_ref[...], x, preferred_element_type=jnp.float32)
    y = y + b_ref[...]                                           # (Ctot, THW) f32

    # theta at full resolution: direct lane-dense store, no relayout.
    th_ref[0] = y[:c8].astype(th_ref.dtype)

    # 2x2 max pool of [phi | g].  Flat spatial index p = h*W + w.
    pg = y[c8:]                                                  # (Cpg, THW)
    thw = pg.shape[-1]
    #   W direction: max(p, p+1)   (result valid at even w)
    a = jnp.maximum(pg, pltpu.roll(pg, thw - 1, 1))
    #   H direction: max(p, p+W)   (result valid at even h)
    bmax = jnp.maximum(a, pltpu.roll(a, thw - w_img, 1))
    # Compact the valid lanes (even h, even w): move spatial onto the sublane axis
    # with one small transpose, then select rows via chunked reshapes.
    bt = bmax.T                                                  # (THW, Cpg)
    cpg = bt.shape[-1]
    th2 = thw // (2 * w_img)                                     # TH // 2
    bt3 = bt.reshape(th2, 2 * w_img, cpg)
    bh = bt3[:, :w_img, :]                                       # even image rows
    tpp = th2 * (w_img // 2)
    bh2 = bh.reshape(tpp, 2, cpg)
    pooled = bh2[:, 0, :]                                        # even columns (TPP, Cpg)

    ph_ref[0] = pooled[:, :c8].astype(ph_ref.dtype)              # (TPP, C8) channels-last
    g_ref[0] = pooled[:, c8:].T.astype(g_ref.dtype)              # (C2, TPP) channels-first


# -----------------------------------------------------------------------------
# Kernel 2: q-tiled attention + output 1x1 conv + gamma-scaled residual.
# -----------------------------------------------------------------------------
def _attn_kernel(gamma_ref, x_ref, th_ref, ph_ref, g_ref, wo_ref, bo_ref, out_ref,
                 *, mxu_dtype, approx_recip):
    # gamma_ref: (1, 1)       SMEM f32
    # x_ref    : (1, C, TQ)   f32   residual (native NCHW view)
    # th_ref   : (1, C8, TQ)  theta, channels-first (queries on lanes)
    # ph_ref   : (1, HWp, C8) pooled phi, channels-last (VMEM-resident across q)
    # g_ref    : (1, C2, HWp) pooled g, channels-first (VMEM-resident across q)
    # wo_ref   : (C, C2)      mxu
    # bo_ref   : (C, 1)       f32
    # out_ref  : (1, C, TQ)   f32
    theta = th_ref[0].astype(mxu_dtype)                          # (C8, TQ)
    phi = ph_ref[0].astype(mxu_dtype)                            # (HWp, C8)

    # s[k, q] = <phi_k, theta_q>; softmax over keys (sublane axis).
    s = jnp.dot(phi, theta, preferred_element_type=jnp.float32)  # (HWp, TQ)
    s_max = jnp.max(s, axis=0, keepdims=True)                    # (1, TQ)
    z = s - s_max
    if jnp.dtype(mxu_dtype) == jnp.dtype(jnp.bfloat16):
        z = z.astype(jnp.bfloat16)                               # bf16 exp + bf16 probs
    p = jnp.exp(z)
    denom = jnp.sum(p, axis=0, keepdims=True, dtype=jnp.float32)

    # Deferred softmax normalization: scale the small (C2, TQ) context instead of
    # the large (HWp, TQ) probability tile.
    ctx = jnp.dot(g_ref[0].astype(mxu_dtype), p.astype(mxu_dtype),
                  preferred_element_type=jnp.float32)            # (C2, TQ)
    ctx = ctx * pl.reciprocal(denom, approx=approx_recip)

    o = jnp.dot(wo_ref[...], ctx.astype(mxu_dtype),
                preferred_element_type=jnp.float32) + bo_ref[...]  # (C, TQ)

    out_ref[0] = (gamma_ref[0, 0] * o + x_ref[0]).astype(out_ref.dtype)


# -----------------------------------------------------------------------------
# Tile / VMEM helpers (generation-aware).
# -----------------------------------------------------------------------------
def _vmem_capacity_bytes():
    try:
        return int(pltpu.get_tpu_info().vmem_capacity_bytes)
    except Exception:
        return 64 << 20  # conservative (v7x per-core)


def _vmem_limit(need, cap):
    cap_lim = max(int(0.7 * cap), 32 << 20)
    return int(min(max(need, 32 << 20), cap_lim))


def _pick_row_tile(h, w, c, cap):
    """Row tile TH: TH==H always legal; tiled candidates need TH*W % 512 == 0 so the
    x/theta block lane dim and the pooled block lane dim stay 128-aligned."""
    budget = max(min(16 << 20, cap // 4), 1 << 20)
    cands = [h] + [th for th in range(2, h, 2) if h % th == 0 and (th * w) % 512 == 0]
    fitting = [th for th in cands if th * w * c * 4 <= budget]
    return max(fitting) if fitting else min(cands)


def _pick_q_tile(hw, hwp, cap):
    """Query tile: a multiple of 128 dividing HW, sized so the (HWp, TQ) score-tile
    intermediates stay within ~1/3 of the VMEM cap."""
    budget = max(cap // 3, 4 << 20)
    max_tq = max(budget // max(4 * hwp * 4, 1), 128)
    max_tq = min(max_tq, 256 if hwp >= 2048 else 512)
    best = None
    t = 128
    while t <= min(hw, max_tq):
        if hw % t == 0:
            best = t
        t += 128
    return best if best is not None else hw


# -----------------------------------------------------------------------------
# Wrapper
# -----------------------------------------------------------------------------
@functools.partial(jax.jit, static_argnames=("mxu_dtype",))
def attention_forward(x_nchw, params, mxu_dtype=jnp.bfloat16):
    B, C, H, W = x_nchw.shape
    assert C % 8 == 0 and H % 2 == 0 and W % 2 == 0
    C8, C2 = C // 8, C // 2
    Ctot = 2 * C8 + C2
    HW, HWp = H * W, (H // 2) * (W // 2)
    interm = mxu_dtype
    isz = jnp.dtype(interm).itemsize
    cap = _vmem_capacity_bytes()

    # Native channels-first view of the NCHW input -- free, no transpose.
    x_cf = x_nchw.reshape(B, C, HW).astype(jnp.float32)

    w_cat = jnp.concatenate([params["w_theta"], params["w_phi"], params["w_g"]],
                            axis=0).astype(mxu_dtype)            # (Ctot, C)
    b_cat = jnp.concatenate([params["b_theta"], params["b_phi"], params["b_g"]],
                            axis=0).reshape(Ctot, 1).astype(jnp.float32)

    # ---- Kernel 1: fused projection + 2x2 max pool -----------------------------
    TH = _pick_row_tile(H, W, C, cap)
    THW = TH * W
    TPP = (TH // 2) * (W // 2)
    n_t = H // TH

    blk1 = C * THW * 4 + C8 * THW * isz + TPP * C8 * isz + C2 * TPP * isz
    extra1 = 5 * Ctot * THW * 4 + Ctot * C * isz + Ctot * 4

    theta_cf, phi_cl, g_cf = pl.pallas_call(
        functools.partial(_proj_pool_kernel, w_img=W, mxu_dtype=mxu_dtype),
        out_shape=(
            jax.ShapeDtypeStruct((B, C8, HW), interm),
            jax.ShapeDtypeStruct((B, HWp, C8), interm),
            jax.ShapeDtypeStruct((B, C2, HWp), interm),
        ),
        grid=(B, n_t),
        in_specs=[
            pl.BlockSpec((1, C, THW), lambda b, t: (b, 0, t)),
            pl.BlockSpec((Ctot, C), lambda b, t: (0, 0)),
            pl.BlockSpec((Ctot, 1), lambda b, t: (0, 0)),
        ],
        out_specs=[
            pl.BlockSpec((1, C8, THW), lambda b, t: (b, 0, t)),
            pl.BlockSpec((1, TPP, C8), lambda b, t: (b, t, 0)),
            pl.BlockSpec((1, C2, TPP), lambda b, t: (b, 0, t)),
        ],
        compiler_params=pltpu.CompilerParams(
            dimension_semantics=("parallel", "parallel"),
            vmem_limit_bytes=_vmem_limit(2 * blk1 + extra1, cap)),
    )(x_cf, w_cat, b_cat)

    # ---- Kernel 2: q-tiled attention --------------------------------------------
    TQ = _pick_q_tile(HW, HWp, cap)
    n_q = HW // TQ

    gamma = params["gamma"].reshape(1, 1).astype(jnp.float32)
    w_o = params["w_o"].astype(mxu_dtype)                        # (C, C2)
    b_o = params["b_o"].reshape(C, 1).astype(jnp.float32)

    blk2 = 2 * C * TQ * 4 + C8 * TQ * isz
    resident2 = HWp * C8 * isz + C2 * HWp * isz + C * C2 * isz + C * 4
    extra2 = 4 * HWp * TQ * 4                                     # s / z / p / sums

    out = pl.pallas_call(
        functools.partial(_attn_kernel, mxu_dtype=mxu_dtype,
                          approx_recip=(jnp.dtype(mxu_dtype) != jnp.dtype(jnp.float32))),
        out_shape=jax.ShapeDtypeStruct((B, C, HW), jnp.float32),
        grid=(B, n_q),
        in_specs=[
            pl.BlockSpec(memory_space=pltpu.MemorySpace.SMEM),    # gamma (1,1)
            pl.BlockSpec((1, C, TQ), lambda b, q: (b, 0, q)),     # x (residual)
            pl.BlockSpec((1, C8, TQ), lambda b, q: (b, 0, q)),    # theta (q tile)
            pl.BlockSpec((1, HWp, C8), lambda b, q: (b, 0, 0)),   # phi   (resident)
            pl.BlockSpec((1, C2, HWp), lambda b, q: (b, 0, 0)),   # g     (resident)
            pl.BlockSpec((C, C2), lambda b, q: (0, 0)),           # w_o
            pl.BlockSpec((C, 1), lambda b, q: (0, 0)),            # b_o
        ],
        out_specs=pl.BlockSpec((1, C, TQ), lambda b, q: (b, 0, q)),
        compiler_params=pltpu.CompilerParams(
            dimension_semantics=("parallel", "parallel"),
            vmem_limit_bytes=_vmem_limit(2 * blk2 + 2 * resident2 + extra2, cap)),
    )(gamma, x_cf, theta_cf, phi_cl, g_cf, w_o, b_o)

    return out.reshape(B, C, H, W)


# -----------------------------------------------------------------------------
# Pure-JAX f32 reference (same math as the PyTorch module, channels-first).
# -----------------------------------------------------------------------------
def attention_reference(x, params):
    B, C, H, W = x.shape
    hi = lax.Precision.HIGHEST

    def conv(w, b, inp):  # w (Co, Ci), b (Co,), inp (B, Ci, H, W)
        return jnp.einsum("oc,bcxy->boxy", w, inp, precision=hi) + b[None, :, None, None]

    theta = conv(params["w_theta"], params["b_theta"], x)        # (B, C8, H, W)
    phi = conv(params["w_phi"], params["b_phi"], x)
    g = conv(params["w_g"], params["b_g"], x)

    def pool(a):
        Bc, Cc, Hh, Ww = a.shape
        return jnp.max(a.reshape(Bc, Cc, Hh // 2, 2, Ww // 2, 2), axis=(3, 5))

    phi, g = pool(phi), pool(g)
    theta_f = theta.reshape(B, C // 8, H * W)
    phi_f = phi.reshape(B, C // 8, -1)
    g_f = g.reshape(B, C // 2, -1)

    s = jnp.einsum("bcq,bck->bqk", theta_f, phi_f, precision=hi)
    beta = jax.nn.softmax(s, axis=-1)
    o_pre = jnp.einsum("bck,bqk->bcq", g_f, beta, precision=hi)
    o = jnp.einsum("oc,bcq->boq", params["w_o"], o_pre, precision=hi) \
        + params["b_o"][None, :, None]
    return params["gamma"] * o.reshape(B, C, H, W) + x


# -----------------------------------------------------------------------------
# Deterministic parameter init (orthogonal conv weights, zero biases, gamma=0,
# mirroring init_weight / nn.Parameter(torch.tensor(0.0)) in the module).
# Weights stored (out_ch, in_ch) = PyTorch conv weight[:, :, 0, 0].
# -----------------------------------------------------------------------------
def init_params(key, channels):
    C, C8, C2 = channels, channels // 8, channels // 2
    k1, k2, k3, k4 = jax.random.split(key, 4)
    ortho = jax.nn.initializers.orthogonal()
    return {
        "w_theta": ortho(k1, (C8, C), jnp.float32),
        "b_theta": jnp.zeros((C8,), jnp.float32),
        "w_phi": ortho(k2, (C8, C), jnp.float32),
        "b_phi": jnp.zeros((C8,), jnp.float32),
        "w_g": ortho(k3, (C2, C), jnp.float32),
        "b_g": jnp.zeros((C2,), jnp.float32),
        "w_o": ortho(k4, (C, C2), jnp.float32),
        "b_o": jnp.zeros((C,), jnp.float32),
        "gamma": jnp.asarray(0.0, jnp.float32),   # module initializes gamma = 0
    }


if __name__ == "__main__":
    B, C, H, W = 2, 32, 16, 16        # C divisible by 8; H, W even
    key = jax.random.PRNGKey(0)
    kx, kp = jax.random.split(key)
    x = jax.random.normal(kx, (B, C, H, W), jnp.float32)
    params = init_params(kp, C)

    # gamma = 0 (module-faithful init): output must equal the input exactly.
    out0 = jax.block_until_ready(attention_forward(x, params, mxu_dtype=jnp.bfloat16))
    assert out0.shape == (B, C, H, W)
    assert jnp.allclose(out0, x, atol=1e-5, rtol=1e-5)

    # gamma = 1: exercise the full attention path.
    params_g = dict(params, gamma=jnp.asarray(1.0, jnp.float32))
    ref = attention_reference(x, params_g)

    # f32 mode: tight check against the reference.
    out_f32 = jax.block_until_ready(attention_forward(x, params_g, mxu_dtype=jnp.float32))
    assert jnp.allclose(out_f32, ref, atol=1e-3, rtol=1e-3)

    # bf16 MXU / bf16 intermediates / bf16 exp (perf path): abs + relative checks.
    out_bf16 = jax.block_until_ready(attention_forward(x, params_g, mxu_dtype=jnp.bfloat16))
    assert out_bf16.shape == (B, C, H, W)
    err = jnp.abs(out_bf16 - ref)
    assert float(jnp.max(err)) < 1.5e-1
    assert float(jnp.max(err / (jnp.abs(ref) + 1.0))) < 1e-1

    print("KERNEL_OK")
</pallas_src>

<mosaic_0001>
module attributes {stable_mosaic.version = 11 : i64} {
  func.func @_proj_pool_kernel(%arg0: i32, %arg1: i32, %arg2: memref<1x32x256xf32, #tpu.memory_space<vmem>>, %arg3: memref<24x32xbf16, #tpu.memory_space<vmem>>, %arg4: memref<24x1xf32, #tpu.memory_space<vmem>>, %arg5: memref<1x4x256xbf16, #tpu.memory_space<vmem>>, %arg6: memref<1x64x4xbf16, #tpu.memory_space<vmem>>, %arg7: memref<1x16x64xbf16, #tpu.memory_space<vmem>>) attributes {dimension_semantics = [#tpu.dimension_semantics<parallel>, #tpu.dimension_semantics<parallel>], iteration_bounds = array<i64: 2, 1>, scalar_prefetch = 0 : i64, scratch_operands = 0 : i64, tpu.core_type = #tpu.core_type<tc>, window_params = [{transform_indices = @transform_0, window_bounds = array<i64: 1, 32, 256>}, {pipeline_mode = #tpu.pipeline_mode<synchronous>, transform_indices = @transform_1, window_bounds = array<i64: 24, 32>}, {pipeline_mode = #tpu.pipeline_mode<synchronous>, transform_indices = @transform_2, window_bounds = array<i64: 24, 1>}, {transform_indices = @transform_3, window_bounds = array<i64: 1, 4, 256>}, {transform_indices = @transform_4, window_bounds = array<i64: 1, 64, 4>}, {transform_indices = @transform_5, window_bounds = array<i64: 1, 16, 64>}]} {
    %c0 = arith.constant 0 : index
    %c0_0 = arith.constant 0 : index
    %c0_1 = arith.constant 0 : index
    %0 = vector.load %arg2[%c0, %c0_0, %c0_1] : memref<1x32x256xf32, #tpu.memory_space<vmem>>, vector<1x32x256xf32>
    %1 = vector.shape_cast %0 : vector<1x32x256xf32> to vector<32x256xf32>
    %2 = arith.truncf %1 : vector<32x256xf32> to vector<32x256xbf16>
    %c0_2 = arith.constant 0 : index
    %c0_3 = arith.constant 0 : index
    %3 = vector.load %arg3[%c0_2, %c0_3] : memref<24x32xbf16, #tpu.memory_space<vmem>>, vector<24x32xbf16>
    %cst = arith.constant dense<0.000000e+00> : vector<24x256xf32>
    %4 = tpu.matmul %3, %2, %cst {dimension_numbers = #tpu.dot_dimension_numbers<[1], [0], [0], [1], [0, 0, 1, 1], [], []>} : vector<24x32xbf16>, vector<32x256xbf16>, vector<24x256xf32> -> vector<24x256xf32>
    %c0_4 = arith.constant 0 : index
    %c0_5 = arith.constant 0 : index
    %5 = vector.load %arg4[%c0_4, %c0_5] : memref<24x1xf32, #tpu.memory_space<vmem>>, vector<24x1xf32>
    %6 = vector.broadcast %5 : vector<24x1xf32> to vector<24x256xf32>
    %7 = arith.addf %4, %6 : vector<24x256xf32>
    %8 = vector.extract_strided_slice %7 {offsets = [0, 0], sizes = [4, 256], strides = [1, 1]} : vector<24x256xf32> to vector<4x256xf32>
    %9 = arith.truncf %8 : vector<4x256xf32> to vector<4x256xbf16>
    %c0_6 = arith.constant 0 : index
    %c0_7 = arith.constant 0 : index
    %c0_8 = arith.constant 0 : index
    %10 = vector.load %arg5[%c0_6, %c0_7, %c0_8] : memref<1x4x256xbf16, #tpu.memory_space<vmem>>, vector<1x4x256xbf16>
    %11 = vector.shape_cast %10 : vector<1x4x256xbf16> to vector<4x256xbf16>
    %12 = vector.shape_cast %9 : vector<4x256xbf16> to vector<1x4x256xbf16>
    tpu.vector_store %arg5[%c0_6, %c0_7, %c0_8], %12 {strides = array<i32>} : memref<1x4x256xbf16, #tpu.memory_space<vmem>>, vector<1x4x256xbf16>,
    %13 = vector.extract_strided_slice %7 {offsets = [4, 0], sizes = [20, 256], strides = [1, 1]} : vector<24x256xf32> to vector<20x256xf32>
    %c255_i32 = arith.constant 255 : i32
    %14 = tpu.dynamic_rotate %13 by %c255_i32 dim 1 : vector<20x256xf32>, i32 -> vector<20x256xf32>
    %15 = arith.maximumf %13, %14 : vector<20x256xf32>
    %c240_i32 = arith.constant 240 : i32
    %16 = tpu.dynamic_rotate %15 by %c240_i32 dim 1 : vector<20x256xf32>, i32 -> vector<20x256xf32>
    %17 = arith.maximumf %15, %16 : vector<20x256xf32>
    %18 = tpu.transpose %17, [1, 0] : vector<20x256xf32> -> vector<256x20xf32>
    %19 = vector.shape_cast %18 : vector<256x20xf32> to vector<8x32x20xf32>
    %20 = vector.extract_strided_slice %19 {offsets = [0, 0, 0], sizes = [8, 16, 20], strides = [1, 1, 1]} : vector<8x32x20xf32> to vector<8x16x20xf32>
    %21 = vector.shape_cast %20 : vector<8x16x20xf32> to vector<64x2x20xf32>
    %22 = vector.extract_strided_slice %21 {offsets = [0, 0, 0], sizes = [64, 1, 20], strides = [1, 1, 1]} : vector<64x2x20xf32> to vector<64x1x20xf32>
    %23 = vector.shape_cast %22 : vector<64x1x20xf32> to vector<64x20xf32>
    %24 = vector.extract_strided_slice %23 {offsets = [0, 0], sizes = [64, 4], strides = [1, 1]} : vector<64x20xf32> to vector<64x4xf32>
    %25 = arith.truncf %24 : vector<64x4xf32> to vector<64x4xbf16>
    %c0_9 = arith.constant 0 : index
    %c0_10 = arith.constant 0 : index
    %c0_11 = arith.constant 0 : index
    %26 = vector.load %arg6[%c0_9, %c0_10, %c0_11] : memref<1x64x4xbf16, #tpu.memory_space<vmem>>, vector<1x64x4xbf16>
    %27 = vector.shape_cast %26 : vector<1x64x4xbf16> to vector<64x4xbf16>
    %28 = vector.shape_cast %25 : vector<64x4xbf16> to vector<1x64x4xbf16>
    tpu.vector_store %arg6[%c0_9, %c0_10, %c0_11], %28 {strides = array<i32>} : memref<1x64x4xbf16, #tpu.memory_space<vmem>>, vector<1x64x4xbf16>,
    %29 = vector.extract_strided_slice %23 {offsets = [0, 4], sizes = [64, 16], strides = [1, 1]} : vector<64x20xf32> to vector<64x16xf32>
    %30 = tpu.transpose %29, [1, 0] : vector<64x16xf32> -> vector<16x64xf32>
    %31 = arith.truncf %30 : vector<16x64xf32> to vector<16x64xbf16>
    %c0_12 = arith.constant 0 : index
    %c0_13 = arith.constant 0 : index
    %c0_14 = arith.constant 0 : index
    %32 = vector.load %arg7[%c0_12, %c0_13, %c0_14] : memref<1x16x64xbf16, #tpu.memory_space<vmem>>, vector<1x16x64xbf16>
    %33 = vector.shape_cast %32 : vector<1x16x64xbf16> to vector<16x64xbf16>
    %34 = vector.shape_cast %31 : vector<16x64xbf16> to vector<1x16x64xbf16>
    tpu.vector_store %arg7[%c0_12, %c0_13, %c0_14], %34 {strides = array<i32>} : memref<1x16x64xbf16, #tpu.memory_space<vmem>>, vector<1x16x64xbf16>,
    return
  }
  func.func @transform_0(%arg0: i32, %arg1: i32) -> (i32, i32, i32) {
    %c0_i32 = arith.constant 0 : i32
    %c0_i32_0 = arith.constant 0 : i32
    return %arg0, %c0_i32, %arg1 : i32, i32, i32
  }
  func.func @transform_1(%arg0: i32, %arg1: i32) -> (i32, i32) {
    %c0_i32 = arith.constant 0 : i32
    %c0_i32_0 = arith.constant 0 : i32
    %c0_i32_1 = arith.constant 0 : i32
    return %c0_i32, %c0_i32_0 : i32, i32
  }
  func.func @transform_2(%arg0: i32, %arg1: i32) -> (i32, i32) {
    %c0_i32 = arith.constant 0 : i32
    %c0_i32_0 = arith.constant 0 : i32
    %c0_i32_1 = arith.constant 0 : i32
    return %c0_i32, %c0_i32_0 : i32, i32
  }
  func.func @transform_3(%arg0: i32, %arg1: i32) -> (i32, i32, i32) {
    %c0_i32 = arith.constant 0 : i32
    %c0_i32_0 = arith.constant 0 : i32
    return %arg0, %c0_i32, %arg1 : i32, i32, i32
  }
  func.func @transform_4(%arg0: i32, %arg1: i32) -> (i32, i32, i32) {
    %c0_i32 = arith.constant 0 : i32
    %c0_i32_0 = arith.constant 0 : i32
    return %arg0, %arg1, %c0_i32 : i32, i32, i32
  }
  func.func @transform_5(%arg0: i32, %arg1: i32) -> (i32, i32, i32) {
    %c0_i32 = arith.constant 0 : i32
    %c0_i32_0 = arith.constant 0 : i32
    return %arg0, %c0_i32, %arg1 : i32, i32, i32
  }
}

module attributes {stable_mosaic.version = 11 : i64} {
  func.func @_attn_kernel(%arg0: i32, %arg1: i32, %arg2: memref<1x1xf32, #tpu.memory_space<smem>>, %arg3: memref<1x32x256xf32, #tpu.memory_space<vmem>>, %arg4: memref<1x4x256xbf16, #tpu.memory_space<vmem>>, %arg5: memref<1x64x4xbf16, #tpu.memory_space<vmem>>, %arg6: memref<1x16x64xbf16, #tpu.memory_space<vmem>>, %arg7: memref<32x16xbf16, #tpu.memory_space<vmem>>, %arg8: memref<32x1xf32, #tpu.memory_space<vmem>>, %arg9: memref<1x32x256xf32, #tpu.memory_space<vmem>>) attributes {dimension_semantics = [#tpu.dimension_semantics<parallel>, #tpu.dimension_semantics<parallel>], iteration_bounds = array<i64: 2, 1>, scalar_prefetch = 0 : i64, scratch_operands = 0 : i64, tpu.core_type = #tpu.core_type<tc>, window_params = [{transform_indices = @transform_0, window_bounds = array<i64: 1, 1>}, {transform_indices = @transform_1, window_bounds = array<i64: 1, 32, 256>}, {transform_indices = @transform_2, window_bounds = array<i64: 1, 4, 256>}, {transform_indices = @transform_3, window_bounds = array<i64: 1, 64, 4>}, {transform_indices = @transform_4, window_bounds = array<i64: 1, 16, 64>}, {pipeline_mode = #tpu.pipeline_mode<synchronous>, transform_indices = @transform_5, window_bounds = array<i64: 32, 16>}, {pipeline_mode = #tpu.pipeline_mode<synchronous>, transform_indices = @transform_6, window_bounds = array<i64: 32, 1>}, {transform_indices = @transform_7, window_bounds = array<i64: 1, 32, 256>}]} {
    %c0 = arith.constant 0 : index
    %c0_0 = arith.constant 0 : index
    %c0_1 = arith.constant 0 : index
    %0 = vector.load %arg4[%c0, %c0_0, %c0_1] : memref<1x4x256xbf16, #tpu.memory_space<vmem>>, vector<1x4x256xbf16>
    %1 = vector.shape_cast %0 : vector<1x4x256xbf16> to vector<4x256xbf16>
    %c0_2 = arith.constant 0 : index
    %c0_3 = arith.constant 0 : index
    %c0_4 = arith.constant 0 : index
    %2 = vector.load %arg5[%c0_2, %c0_3, %c0_4] : memref<1x64x4xbf16, #tpu.memory_space<vmem>>, vector<1x64x4xbf16>
    %3 = vector.shape_cast %2 : vector<1x64x4xbf16> to vector<64x4xbf16>
    %cst = arith.constant dense<0.000000e+00> : vector<64x256xf32>
    %4 = tpu.matmul %3, %1, %cst {dimension_numbers = #tpu.dot_dimension_numbers<[1], [0], [0], [1], [0, 0, 1, 1], [], []>} : vector<64x4xbf16>, vector<4x256xbf16>, vector<64x256xf32> -> vector<64x256xf32>
    %cst_5 = arith.constant dense<0xFF800000> : vector<256xf32>
    %5 = vector.multi_reduction <maximumf>, %4, %cst_5 [0] : vector<64x256xf32> to vector<256xf32>
    %6 = vector.shape_cast %5 : vector<256xf32> to vector<1x256xf32>
    %7 = vector.broadcast %6 : vector<1x256xf32> to vector<64x256xf32>
    %8 = arith.subf %4, %7 : vector<64x256xf32>
    %9 = arith.truncf %8 : vector<64x256xf32> to vector<64x256xbf16>
    %10 = math.exp %9 : vector<64x256xbf16>
    %11 = arith.extf %10 : vector<64x256xbf16> to vector<64x256xf32>
    %cst_6 = arith.constant dense<0.000000e+00> : vector<256xf32>
    %12 = vector.multi_reduction <add>, %11, %cst_6 [0] : vector<64x256xf32> to vector<256xf32>
    %13 = vector.shape_cast %12 : vector<256xf32> to vector<1x256xf32>
    %c0_7 = arith.constant 0 : index
    %c0_8 = arith.constant 0 : index
    %c0_9 = arith.constant 0 : index
    %14 = vector.load %arg6[%c0_7, %c0_8, %c0_9] : memref<1x16x64xbf16, #tpu.memory_space<vmem>>, vector<1x16x64xbf16>
    %15 = vector.shape_cast %14 : vector<1x16x64xbf16> to vector<16x64xbf16>
    %cst_10 = arith.constant dense<0.000000e+00> : vector<16x256xf32>
    %16 = tpu.matmul %15, %10, %cst_10 {dimension_numbers = #tpu.dot_dimension_numbers<[1], [0], [0], [1], [0, 0, 1, 1], [], []>} : vector<16x64xbf16>, vector<64x256xbf16>, vector<16x256xf32> -> vector<16x256xf32>
    %17 = tpu.reciprocal %13 {approx = true} : vector<1x256xf32> -> vector<1x256xf32>
    %18 = vector.broadcast %17 : vector<1x256xf32> to vector<16x256xf32>
    %19 = arith.mulf %16, %18 : vector<16x256xf32>
    %c0_11 = arith.constant 0 : index
    %c0_12 = arith.constant 0 : index
    %20 = vector.load %arg7[%c0_11, %c0_12] : memref<32x16xbf16, #tpu.memory_space<vmem>>, vector<32x16xbf16>
    %21 = arith.truncf %19 : vector<16x256xf32> to vector<16x256xbf16>
    %cst_13 = arith.constant dense<0.000000e+00> : vector<32x256xf32>
    %22 = tpu.matmul %20, %21, %cst_13 {dimension_numbers = #tpu.dot_dimension_numbers<[1], [0], [0], [1], [0, 0, 1, 1], [], []>} : vector<32x16xbf16>, vector<16x256xbf16>, vector<32x256xf32> -> vector<32x256xf32>
    %c0_14 = arith.constant 0 : index
    %c0_15 = arith.constant 0 : index
    %23 = vector.load %arg8[%c0_14, %c0_15] : memref<32x1xf32, #tpu.memory_space<vmem>>, vector<32x1xf32>
    %24 = vector.broadcast %23 : vector<32x1xf32> to vector<32x256xf32>
    %25 = arith.addf %22, %24 : vector<32x256xf32>
    %c0_16 = arith.constant 0 : index
    %c0_17 = arith.constant 0 : index
    %26 = memref.load %arg2[%c0_16, %c0_17] : memref<1x1xf32, #tpu.memory_space<smem>>
    %27 = vector.broadcast %26 : f32 to vector<32x256xf32>
    %28 = arith.mulf %27, %25 : vector<32x256xf32>
    %c0_18 = arith.constant 0 : index
    %c0_19 = arith.constant 0 : index
    %c0_20 = arith.constant 0 : index
    %29 = vector.load %arg3[%c0_18, %c0_19, %c0_20] : memref<1x32x256xf32, #tpu.memory_space<vmem>>, vector<1x32x256xf32>
    %30 = vector.shape_cast %29 : vector<1x32x256xf32> to vector<32x256xf32>
    %31 = arith.addf %28, %30 : vector<32x256xf32>
    %c0_21 = arith.constant 0 : index
    %c0_22 = arith.constant 0 : index
    %c0_23 = arith.constant 0 : index
    %32 = vector.load %arg9[%c0_21, %c0_22, %c0_23] : memref<1x32x256xf32, #tpu.memory_space<vmem>>, vector<1x32x256xf32>
    %33 = vector.shape_cast %32 : vector<1x32x256xf32> to vector<32x256xf32>
    %34 = vector.shape_cast %31 : vector<32x256xf32> to vector<1x32x256xf32>
    tpu.vector_store %arg9[%c0_21, %c0_22, %c0_23], %34 {strides = array<i32>} : memref<1x32x256xf32, #tpu.memory_space<vmem>>, vector<1x32x256xf32>,
    return
  }
  func.func @transform_0(%arg0: i32, %arg1: i32) -> (i32, i32) {
    %c0_i32 = arith.constant 0 : i32
    %c0_i32_0 = arith.constant 0 : i32
    %c0_i32_1 = arith.constant 0 : i32
    return %c0_i32, %c0_i32_0 : i32, i32
  }
  func.func @transform_1(%arg0: i32, %arg1: i32) -> (i32, i32, i32) {
    %c0_i32 = arith.constant 0 : i32
    %c0_i32_0 = arith.constant 0 : i32
    return %arg0, %c0_i32, %arg1 : i32, i32, i32
  }
  func.func @transform_2(%arg0: i32, %arg1: i32) -> (i32, i32, i32) {
    %c0_i32 = arith.constant 0 : i32
    %c0_i32_0 = arith.constant 0 : i32
    return %arg0, %c0_i32, %arg1 : i32, i32, i32
  }
  func.func @transform_3(%arg0: i32, %arg1: i32) -> (i32, i32, i32) {
    %c0_i32 = arith.constant 0 : i32
    %c0_i32_0 = arith.constant 0 : i32
    %c0_i32_1 = arith.constant 0 : i32
    return %arg0, %c0_i32, %c0_i32_0 : i32, i32, i32
  }
  func.func @transform_4(%arg0: i32, %arg1: i32) -> (i32, i32, i32) {
    %c0_i32 = arith.constant 0 : i32
    %c0_i32_0 = arith.constant 0 : i32
    %c0_i32_1 = arith.constant 0 : i32
    return %arg0, %c0_i32, %c0_i32_0 : i32, i32, i32
  }
  func.func @transform_5(%arg0: i32, %arg1: i32) -> (i32, i32) {
    %c0_i32 = arith.constant 0 : i32
    %c0_i32_0 = arith.constant 0 : i32
    %c0_i32_1 = arith.constant 0 : i32
    return %c0_i32, %c0_i32_0 : i32, i32
  }
  func.func @transform_6(%arg0: i32, %arg1: i32) -> (i32, i32) {
    %c0_i32 = arith.constant 0 : i32
    %c0_i32_0 = arith.constant 0 : i32
    %c0_i32_1 = arith.constant 0 : i32
    return %c0_i32, %c0_i32_0 : i32, i32
  }
  func.func @transform_7(%arg0: i32, %arg1: i32) -> (i32, i32, i32) {
    %c0_i32 = arith.constant 0 : i32
    %c0_i32_0 = arith.constant 0 : i32
    return %arg0, %c0_i32, %arg1 : i32, i32, i32
  }
}

</mosaic_0001>

<llo_original>
// kernel: attention_forward.3
$region0: #{attention_forward.3}
  #allocation0 [shape = 'u32[]', space=smem, size = 0x4, offset = 0x4, fixed_abs, tag = 'smem constant byte address 0x4 - core index']
  #allocation1 [shape = 'u32[72,128]{1,0:T(1,128)}', space=vmem, size = 0x9000, scoped, tag = 'internal scratch']
  #allocation2 [shape = 'f32[1,1]{1,0:T(1,128)S(6)}', space=smem, size = 0x200, scoped, tag = 'scoped memory for attention_forward.3']
  %s0 = inlined_call_operand.<no memory space> [shape: f32[1,1], index: 0, kind: input, shape index: {}]
  %s1 = inlined_call_operand.vmem [shape: f32[2,32,256], index: 1, kind: input, shape index: {}]
  %s2 = inlined_call_operand.vmem [shape: bf16[2,4,256], index: 2, kind: input, shape index: {}]
  %s3 = inlined_call_operand.vmem [shape: bf16[2,64,4], index: 3, kind: input, shape index: {}]
  %s4 = inlined_call_operand.vmem [shape: bf16[2,16,64], index: 4, kind: input, shape index: {}]
  %s5 = inlined_call_operand.vmem [shape: bf16[32,16], index: 5, kind: input, shape index: {}]
  %s6 = inlined_call_operand.vmem [shape: f32[32,1], index: 6, kind: input, shape index: {}]
  %s7 = inlined_call_operand.vmem [shape: f32[2,32,256], index: 7, kind: output, shape index: {}]
  %s8 = sld [smem:[#allocation0]]
  $region61: #{attention_forward.3} parent=0
    _
  %s10 = ssub.s32 1, %s8
  %s11 = scalar_select 0, %s10, %s8
  %12 = sst [smem:[#allocation2]] %s0
  loop: start=0, step=1, limit=4
  $region2: #{attention_forward.3} parent=0 // loop_pre_header
    _
  $region3: #{attention_forward.3} parent=0 // loop_header
    %s14 = sphi 0, %s18
    %p15 = scmp.ge.s32.totalorder %s14, 4
    %s21 = sphi 0, %s33
    %s22 = sphi 0, %s29
    %s23 = sphi 0, %s21
    %s24 = sphi 0, %s22
    %s25 = sphi 0, %s23
    %s26 = sphi 0, %s24
    %s34 = sphi 0, %s34
    %s36 = sphi 0, %s34
    %s37 = sphi 0, %s36
    %s51 = sphi 0, %s37
    %s59 = sphi 0, %s61
    %s62 = sphi 0, %s59
    %s63 = sphi 0, %s62
    %s79 = sphi 0, %s63
    %s87 = sphi 0, %s89
    %s90 = sphi 0, %s87
    %s91 = sphi 0, %s90
    %s107 = sphi 0, %s91
    %s113 = sphi 0, %s115
    %s116 = sphi 0, %s113
    %s117 = sphi 0, %s116
    %s133 = sphi 0, %s117
    %s139 = sphi 0, %s141
    %s142 = sphi 0, %s139
    %s143 = sphi 0, %s142
    %s159 = sphi 0, %s143
    %s163 = sphi 0, %s163
    %s165 = sphi 0, %s163
    %s166 = sphi 0, %s165
    %s180 = sphi 0, %s166
    %s184 = sphi 0, %s184
    %s186 = sphi 0, %s184
    %s187 = sphi 0, %s186
    %s201 = sphi 0, %s187
    %s209 = sphi 0, %s211
    %s212 = sphi 0, %s209
    %s213 = sphi 0, %s212
    %s229 = sphi 0, %s213
  $region4: #{attention_forward.3} parent=0 // loop_header_branch
    %17 = sbr.rel (%p15) target = $region8
  $region5: #{attention_forward.3} parent=0 // loop_body
    %s19 = ssub.s32 %s14, 1
    %s20 = ssub.s32 %s14, 2
    %s27 = sadd.s32 1, %s22
    %p28 = scmp.ge.s32.totalorder %s27, 1
    %s29 = scalar_select %p28, 0, %s27
    %s30 = sadd.s32 1, %s21
    %s31 = scalar_select %p28, %s30, %s21
    %p32 = scmp.ge.s32.totalorder %s31, 2
    %s33 = scalar_select %p32, 0, %s31
    %s35 = sadd.s32 %s34, 1
    %p38 = scmp.eq.s32.totalorder %s14, 1
    %p39 = scmp.ne.s32.totalorder %s34, %s36
    %p40 = scmp.eq.s32.totalorder %s14, 0
    %p41 = por %p39, %p40
    %p42 = scmp.ne.s32.totalorder %s34, %s36
    %p43 = scmp.eq.s32.totalorder %s19, 1
    %p44 = por %p42, %p43
    %p45 = scmp.ne.s32.totalorder %s36, %s37
    %p46 = scmp.eq.s32.totalorder %s19, 0
    %p47 = por %p45, %p46
    %p48 = scmp.ne.s32.totalorder %s36, %s37
    %p49 = scmp.eq.s32.totalorder %s20, 1
    %p50 = por %p48, %p49
    %p52 = scmp.ne.s32.totalorder %s37, %s51
    %p53 = scmp.eq.s32.totalorder %s20, 0
    %p54 = por %p52, %p53
    %s55 = ssub.s32 %s21, %s33
    %s56 = ssub.s32 %s22, %s29
    %s57 = sor.u32 %s55, %s56
    %p58 = scmp.eq.s32.totalorder %s57, 0
    %s60 = sadd.s32 %s59, 1
    %s61 = scalar_select %p58, %s59, %s60
    %p64 = pneg %p58
    %p65 = scmp.eq.s32.totalorder %s14, 1
    %p66 = por %p64, %p65
    %p67 = scmp.ne.s32.totalorder %s59, %s62
    %p68 = scmp.eq.s32.totalorder %s14, 0
    %p69 = por %p67, %p68
    %p70 = scmp.ne.s32.totalorder %s59, %s62
    %p71 = scmp.eq.s32.totalorder %s19, 1
    %p72 = por %p70, %p71
    %p73 = scmp.ne.s32.totalorder %s62, %s63
    %p74 = scmp.eq.s32.totalorder %s19, 0
    %p75 = por %p73, %p74
    %p76 = scmp.ne.s32.totalorder %s62, %s63
    %p77 = scmp.eq.s32.totalorder %s20, 1
    %p78 = por %p76, %p77
    %p80 = scmp.ne.s32.totalorder %s63, %s79
    %p81 = scmp.eq.s32.totalorder %s20, 0
    %p82 = por %p80, %p81
    %s83 = ssub.s32 %s21, %s33
    %s84 = ssub.s32 %s22, %s29
    %s85 = sor.u32 %s83, %s84
    %p86 = scmp.eq.s32.totalorder %s85, 0
    %s88 = sadd.s32 %s87, 1
    %s89 = scalar_select %p86, %s87, %s88
    %p92 = pneg %p86
    %p93 = scmp.eq.s32.totalorder %s14, 1
    %p94 = por %p92, %p93
    %p95 = scmp.ne.s32.totalorder %s87, %s90
    %p96 = scmp.eq.s32.totalorder %s14, 0
    %p97 = por %p95, %p96
    %p98 = scmp.ne.s32.totalorder %s87, %s90
    %p99 = scmp.eq.s32.totalorder %s19, 1
    %p100 = por %p98, %p99
    %p101 = scmp.ne.s32.totalorder %s90, %s91
    %p102 = scmp.eq.s32.totalorder %s19, 0
    %p103 = por %p101, %p102
    %p104 = scmp.ne.s32.totalorder %s90, %s91
    %p105 = scmp.eq.s32.totalorder %s20, 1
    %p106 = por %p104, %p105
    %p108 = scmp.ne.s32.totalorder %s91, %s107
    %p109 = scmp.eq.s32.totalorder %s20, 0
    %p110 = por %p108, %p109
    %s111 = ssub.s32 %s21, %s33
    %p112 = scmp.eq.s32.totalorder %s111, 0
    %s114 = sadd.s32 %s113, 1
    %s115 = scalar_select %p112, %s113, %s114
    %p118 = pneg %p112
    %p119 = scmp.eq.s32.totalorder %s14, 1
    %p120 = por %p118, %p119
    %p121 = scmp.ne.s32.totalorder %s113, %s116
    %p122 = scmp.eq.s32.totalorder %s14, 0
    %p123 = por %p121, %p122
    %p124 = scmp.ne.s32.totalorder %s113, %s116
    %p125 = scmp.eq.s32.totalorder %s19, 1
    %p126 = por %p124, %p125
    %p127 = scmp.ne.s32.totalorder %s116, %s117
    %p128 = scmp.eq.s32.totalorder %s19, 0
    %p129 = por %p127, %p128
    %p130 = scmp.ne.s32.totalorder %s116, %s117
    %p131 = scmp.eq.s32.totalorder %s20, 1
    %p132 = por %p130, %p131
    %p134 = scmp.ne.s32.totalorder %s117, %s133
    %p135 = scmp.eq.s32.totalorder %s20, 0
    %p136 = por %p134, %p135
    %s137 = ssub.s32 %s21, %s33
    %p138 = scmp.eq.s32.totalorder %s137, 0
    %s140 = sadd.s32 %s139, 1
    %s141 = scalar_select %p138, %s139, %s140
    %p144 = pneg %p138
    %p145 = scmp.eq.s32.totalorder %s14, 1
    %p146 = por %p144, %p145
    %p147 = scmp.ne.s32.totalorder %s139, %s142
    %p148 = scmp.eq.s32.totalorder %s14, 0
    %p149 = por %p147, %p148
    %p150 = scmp.ne.s32.totalorder %s139, %s142
    %p151 = scmp.eq.s32.totalorder %s19, 1
    %p152 = por %p150, %p151
    %p153 = scmp.ne.s32.totalorder %s142, %s143
    %p154 = scmp.eq.s32.totalorder %s19, 0
    %p155 = por %p153, %p154
    %p156 = scmp.ne.s32.totalorder %s142, %s143
    %p157 = scmp.eq.s32.totalorder %s20, 1
    %p158 = por %p156, %p157
    %p160 = scmp.ne.s32.totalorder %s143, %s159
    %p161 = scmp.eq.s32.totalorder %s20, 0
    %p162 = por %p160, %p161
    %s164 = sadd.s32 %s163, 1
    %p167 = scmp.eq.s32.totalorder %s14, 1
    %p168 = scmp.ne.s32.totalorder %s163, %s165
    %p169 = scmp.eq.s32.totalorder %s14, 0
    %p170 = por %p168, %p169
    %p171 = scmp.ne.s32.totalorder %s163, %s165
    %p172 = scmp.eq.s32.totalorder %s19, 1
    %p173 = por %p171, %p172
    %p174 = scmp.ne.s32.totalorder %s165, %s166
    %p175 = scmp.eq.s32.totalorder %s19, 0
    %p176 = por %p174, %p175
    %p177 = scmp.ne.s32.totalorder %s165, %s166
    %p178 = scmp.eq.s32.totalorder %s20, 1
    %p179 = por %p177, %p178
    %p181 = scmp.ne.s32.totalorder %s166, %s180
    %p182 = scmp.eq.s32.totalorder %s20, 0
    %p183 = por %p181, %p182
    %s185 = sadd.s32 %s184, 1
    %p188 = scmp.eq.s32.totalorder %s14, 1
    %p189 = scmp.ne.s32.totalorder %s184, %s186
    %p190 = scmp.eq.s32.totalorder %s14, 0
    %p191 = por %p189, %p190
    %p192 = scmp.ne.s32.totalorder %s184, %s186
    %p193 = scmp.eq.s32.totalorder %s19, 1
    %p194 = por %p192, %p193
    %p195 = scmp.ne.s32.totalorder %s186, %s187
    %p196 = scmp.eq.s32.totalorder %s19, 0
    %p197 = por %p195, %p196
    %p198 = scmp.ne.s32.totalorder %s186, %s187
    %p199 = scmp.eq.s32.totalorder %s20, 1
    %p200 = por %p198, %p199
    %p202 = scmp.ne.s32.totalorder %s187, %s201
    %p203 = scmp.eq.s32.totalorder %s20, 0
    %p204 = por %p202, %p203
    %s205 = ssub.s32 %s21, %s33
    %s206 = ssub.s32 %s22, %s29
    %s207 = sor.u32 %s205, %s206
    %p208 = scmp.eq.s32.totalorder %s207, 0
    %s210 = sadd.s32 %s209, 1
    %s211 = scalar_select %p208, %s209, %s210
    %p214 = pneg %p208
    %p215 = scmp.eq.s32.totalorder %s14, 1
    %p216 = por %p214, %p215
    %p217 = scmp.ne.s32.totalorder %s209, %s212
    %p218 = scmp.eq.s32.totalorder %s14, 0
    %p219 = por %p217, %p218
    %p220 = scmp.ne.s32.totalorder %s209, %s212
    %p221 = scmp.eq.s32.totalorder %s19, 1
    %p222 = por %p220, %p221
    %p223 = scmp.ne.s32.totalorder %s212, %s213
    %p224 = scmp.eq.s32.totalorder %s19, 0
    %p225 = por %p223, %p224
    %p226 = scmp.ne.s32.totalorder %s212, %s213
    %p227 = scmp.eq.s32.totalorder %s20, 1
    %p228 = por %p226, %p227
    %p230 = scmp.ne.s32.totalorder %s213, %s229
    %p231 = scmp.eq.s32.totalorder %s20, 0
    %p232 = por %p230, %p231
    %p233 = scmp.le.s32.totalorder 1, %s14
    %p234 = scmp.lt.s32.totalorder %s14, 3
    %p235 = pnand %p233, %p234
    %p236 = pneg %p235
    // Predicated region
    $region9: #{attention_forward.3} parent=5 // pred_check
      _
    $region10: #{attention_forward.3} parent=5 // pred_check_branch
      %238 = sbr.rel (%p235) target = $region12
    $region11: #{attention_forward.3} parent=5 // pred_region
      %s239 = ssub.s32 %s14, 1
      // Predicated region
      $region13: #{attention_forward.3} parent=11 // pred_check
        %p240 = pneg %p47
      $region14: #{attention_forward.3} parent=11 // pred_check_branch
        %242 = sbr.rel (%p240) target = $region16
      $region15: #{attention_forward.3} parent=11 // pred_region
        _
      $region16: #{attention_forward.3} parent=11 // pred_fallthru
        _
      // Predicated region
      $region17: #{attention_forward.3} parent=11 // pred_check
        %p243 = pneg %p176
      $region18: #{attention_forward.3} parent=11 // pred_check_branch
        %245 = sbr.rel (%p243) target = $region20
      $region19: #{attention_forward.3} parent=11 // pred_region
        _
      $region20: #{attention_forward.3} parent=11 // pred_fallthru
        _
      // Predicated region
      $region21: #{attention_forward.3} parent=11 // pred_check
        %p246 = pneg %p197
      $region22: #{attention_forward.3} parent=11 // pred_check_branch
        %248 = sbr.rel (%p246) target = $region24
      $region23: #{attention_forward.3} parent=11 // pred_region
        _
      $region24: #{attention_forward.3} parent=11 // pred_fallthru
        _
    $region12: #{attention_forward.3} parent=5 // pred_fallthru
      _
    %p249 = scmp.lt.s32.totalorder %s14, 2
    // Predicated region
    $region25: #{attention_forward.3} parent=5 // pred_check
      %p250 = pneg %p249
    $region26: #{attention_forward.3} parent=5 // pred_check_branch
      %252 = sbr.rel (%p250) target = $region28
    $region27: #{attention_forward.3} parent=5 // pred_region
      // Predicated region
      $region29: #{attention_forward.3} parent=27 // pred_check
        %p253 = pneg %p69
      $region30: #{attention_forward.3} parent=27 // pred_check_branch
        %255 = sbr.rel (%p253) target = $region32
      $region31: #{attention_forward.3} parent=27 // pred_region
        %s256 = smul.u32 2, %s22
        %p257 = scmp.lt.s32.totalorder %s21, 1
        %s258 = scalar_select %p257, %s21, 1
        %p259 = scmp.lt.s32.totalorder %s256, 1
        %s260 = scalar_select %p259, %s256, 1
        %s261 = smul.addr %s258, 8
        %s262 = sadd.s32 %s260, %s261
        %s263 = smul.addr %s262, 8
        %s264 = scalar_lea.vmem %s1, %s263
        %s265 = smul.u32 2, %s22
      $region32: #{attention_forward.3} parent=27 // pred_fallthru
        _
      // Predicated region
      $region33: #{attention_forward.3} parent=27 // pred_check
        %p266 = pneg %p97
      $region34: #{attention_forward.3} parent=27 // pred_check_branch
        %268 = sbr.rel (%p266) target = $region36
      $region35: #{attention_forward.3} parent=27 // pred_region
        %s269 = smul.u32 2, %s22
        %p270 = scmp.lt.s32.totalorder %s21, 1
        %s271 = scalar_select %p270, %s21, 1
        %p272 = scmp.lt.s32.totalorder %s269, 1
        %s273 = scalar_select %p272, %s269, 1
        %s274 = smul.addr %s271, 2
        %s275 = sadd.s32 %s273, %s274
        %s276 = smul.addr %s275, 2
        %s277 = scalar_lea.vmem %s2, %s276
        %s278 = smul.u32 2, %s22
      $region36: #{attention_forward.3} parent=27 // pred_fallthru
        _
      // Predicated region
      $region37: #{attention_forward.3} parent=27 // pred_check
        %p279 = pneg %p123
      $region38: #{attention_forward.3} parent=27 // pred_check_branch
        %281 = sbr.rel (%p279) target = $region40
      $region39: #{attention_forward.3} parent=27 // pred_region
        %p282 = scmp.lt.s32.totalorder %s21, 1
        %s283 = scalar_select %p282, %s21, 1
        %s284 = smul.addr %s283, 8
        %s285 = smul.addr %s284, 4
        %s286 = scalar_lea.vmem %s3, %s285
      $region40: #{attention_forward.3} parent=27 // pred_fallthru
        _
      // Predicated region
      $region41: #{attention_forward.3} parent=27 // pred_check
        %p287 = pneg %p149
      $region42: #{attention_forward.3} parent=27 // pred_check_branch
        %289 = sbr.rel (%p287) target = $region44
      $region43: #{attention_forward.3} parent=27 // pred_region
        %p290 = scmp.lt.s32.totalorder %s21, 1
        %s291 = scalar_select %p290, %s21, 1
        %s292 = smul.addr %s291, 2
        %s293 = smul.addr %s292, 4
        %s294 = scalar_lea.vmem %s4, %s293
      $region44: #{attention_forward.3} parent=27 // pred_fallthru
        _
    $region28: #{attention_forward.3} parent=5 // pred_fallthru
      _
    %p295 = scmp.le.s32.totalorder 1, %s14
    %p296 = scmp.lt.s32.totalorder %s14, 3
    %p297 = pnand %p295, %p296
    %p298 = pneg %p297
    // Predicated region
    $region45: #{attention_forward.3} parent=5 // pred_check
      _
    $region46: #{attention_forward.3} parent=5 // pred_check_branch
      %300 = sbr.rel (%p297) target = $region48
    $region47: #{attention_forward.3} parent=5 // pred_region
      %s301 = ssub.s32 %s14, 1
      %p302 = pneg %p47
      %p303 = pneg %p44
      %s304 = smul.u32 2, %s24
      %p305 = scmp.lt.s32.totalorder %s23, 1
      %s306 = scalar_select %p305, %s23, 1
      %p307 = scmp.lt.s32.totalorder %s304, 1
      %s308 = scalar_select %p307, %s304, 1
      %s309 = smul.addr %s306, 8
      %s310 = sadd.s32 %s308, %s309
      %s311 = smul.addr %s310, 8
      %s312 = scalar_lea.vmem %s1, %s311
      %p313 = pneg %p75
      %p314 = pneg %p72
      %s315 = smul.u32 2, %s24
      %p316 = scmp.lt.s32.totalorder %s23, 1
      %s317 = scalar_select %p316, %s23, 1
      %p318 = scmp.lt.s32.totalorder %s315, 1
      %s319 = scalar_select %p318, %s315, 1
      %s320 = smul.addr %s317, 2
      %s321 = sadd.s32 %s319, %s320
      %s322 = smul.addr %s321, 2
      %s323 = scalar_lea.vmem %s2, %s322
      %p324 = pneg %p103
      %p325 = pneg %p100
      %p326 = scmp.lt.s32.totalorder %s23, 1
      %s327 = scalar_select %p326, %s23, 1
      %s328 = smul.addr %s327, 8
      %s329 = smul.addr %s328, 4
      %s330 = scalar_lea.vmem %s3, %s329
      %p331 = pneg %p129
      %p332 = pneg %p126
      %p333 = scmp.lt.s32.totalorder %s23, 1
      %s334 = scalar_select %p333, %s23, 1
      %s335 = smul.addr %s334, 2
      %s336 = smul.addr %s335, 4
      %s337 = scalar_lea.vmem %s4, %s336
      %p338 = pneg %p155
      %p339 = pneg %p152
      %p340 = pneg %p176
      %p341 = pneg %p173
      %p342 = pneg %p197
      %p343 = pneg %p194
      %p344 = pneg %p225
      %p345 = pneg %p222
      %s346 = smul.u32 2, %s24
      %p347 = scmp.lt.s32.totalorder %s23, 1
      %s348 = scalar_select %p347, %s23, 1
      %p349 = scmp.lt.s32.totalorder %s346, 1
      %s350 = scalar_select %p349, %s346, 1
      %s351 = smul.addr %s348, 8
      %s352 = sadd.s32 %s350, %s351
      %s353 = smul.addr %s352, 8
      %s354 = scalar_lea.vmem %s7, %s353
      %s355 = smul.u32 2, %s24
      %p356 = scmp.lt.s32.totalorder %s23, 1
      %s357 = scalar_select %p356, %s23, 1
      %p358 = scmp.lt.s32.totalorder %s355, 1
      %s359 = scalar_select %p358, %s355, 1
      %s360 = smul.addr %s357, 8
      %s361 = sadd.s32 %s359, %s360
      %s362 = smul.addr %s361, 8
      %s363 = scalar_lea.vmem %s1, %s362
      %s364 = smul.u32 2, %s24
      %s365 = smul.u32 2, %s24
      %p366 = scmp.lt.s32.totalorder %s23, 1
      %s367 = scalar_select %p366, %s23, 1
      %p368 = scmp.lt.s32.totalorder %s365, 1
      %s369 = scalar_select %p368, %s365, 1
      %s370 = smul.addr %s367, 2
      %s371 = sadd.s32 %s369, %s370
      %s372 = smul.addr %s371, 2
      %s373 = scalar_lea.vmem %s2, %s372
      %s374 = smul.u32 2, %s24
      %p375 = scmp.lt.s32.totalorder %s23, 1
      %s376 = scalar_select %p375, %s23, 1
      %s377 = smul.addr %s376, 8
      %s378 = smul.addr %s377, 4
      %s379 = scalar_lea.vmem %s3, %s378
      %p380 = scmp.lt.s32.totalorder %s23, 1
      %s381 = scalar_select %p380, %s23, 1
      %s382 = smul.addr %s381, 2
      %s383 = smul.addr %s382, 4
      %s384 = scalar_lea.vmem %s4, %s383
      %s385 = smul.u32 2, %s24
      %p386 = scmp.lt.s32.totalorder %s23, 1
      %s387 = scalar_select %p386, %s23, 1
      %p388 = scmp.lt.s32.totalorder %s385, 1
      %s389 = scalar_select %p388, %s385, 1
      %s390 = smul.addr %s387, 8
      %s391 = sadd.s32 %s389, %s390
      %s392 = smul.addr %s391, 8
      %s393 = scalar_lea.vmem %s7, %s392
      %s394 = smul.u32 2, %s24
      %v396 = vld [vmem:[%s373] sm:$0xf]
      %v397 = vld [vmem:[%s379] sm:$0xf]
      %v398 = vld [vmem:[%s379 + $0x4] sm:$0xf]
      %v399 = vld [vmem:[%s379 + $0x8] sm:$0xf]
      %v400 = vld [vmem:[%s379 + $0xc] sm:$0xf]
      %v401 = vld [vmem:[%s379 + $0x10] sm:$0xf]
      %v402 = vld [vmem:[%s379 + $0x14] sm:$0xf]
      %v403 = vld [vmem:[%s379 + $0x18] sm:$0xf]
      %v404 = vld [vmem:[%s379 + $0x1c] sm:$0xf]
      %v413 = vunpack.c.l.b16 %v397
      %v414 = vunpack.c.l.b16 %v398
      %v415 = vunpack.c.l.b16 %v399
      %v416 = vunpack.c.l.b16 %v400
      %v417 = vunpack.c.l.b16 %v401
      %v418 = vunpack.c.l.b16 %v402
      %v419 = vunpack.c.l.b16 %v403
      %v420 = vunpack.c.l.b16 %v404
      %v421 = vpack.c.b16 %v414, %v413
      %v422 = vpack.c.b16 %v416, %v415
      %v423 = vpack.c.b16 %v418, %v417
      %v424 = vpack.c.b16 %v420, %v419
      %426 = vst [vmem:[#allocation1] ss:$4 sm:$0xff] %v396
      %v427 = vld.sshfl [vmem:[#allocation1] sm:$0xff pattern:$0x73625140]
      %v428 = vld.sshfl [vmem:[#allocation1 + $0x8] sm:$0xff pattern:$0x73625140]
      %vm429 = vcmask 31744
      %v431 = vsel %vm429, %v421, 0
      %v434 = vsel %vm429, %v422, 0
      %v437 = vsel %vm429, %v423, 0
      %v440 = vsel %vm429, %v424, 0
      %vm442 = vcmask 1041408
      %v443 = vsel %vm442, %v427, 0
      %v445 = vsel %vm442, %v428, 0
      %447 = vmatpush.bf16.msra.mxu0 0
      %448 = vmatpush.bf16.msra.mxu0 0
      %449 = vmatpush.bf16.msra.mxu0 0
      %450 = vmatpush.bf16.msra.mxu0 0
      %451 = vmatpush.bf16.msra.mxu0 0
      %452 = vmatpush.bf16.msra.mxu0 0
      %453 = vmatpush.bf16.msra.mxu0 0
      %454 = vmatpush.bf16.msra.mxu0 %v443
      %455 = vmatmul.bf16.gmra.mxu0 %v431
      %v456 = vpop.f32.mrf.mxu0
      %v457 = vadd.f32 0.0, %v456
      %v458 = vpop.f32.mrf.mxu0
      %v459 = vadd.f32 0.0, %v458
      %460 = vmatmul.bf16.gmra.mxu0 %v434
      %v461 = vpop.f32.mrf.mxu0
      %v462 = vadd.f32 0.0, %v461
      %v463 = vpop.f32.mrf.mxu0
      %v464 = vadd.f32 0.0, %v463
      %465 = vmatmul.bf16.gmra.mxu0 %v437
      %v466 = vpop.f32.mrf.mxu0
      %v467 = vadd.f32 0.0, %v466
      %v468 = vpop.f32.mrf.mxu0
      %v469 = vadd.f32 0.0, %v468
      %470 = vmatmul.bf16.gmra.mxu0 %v440
      %v471 = vpop.f32.mrf.mxu0
      %v472 = vadd.f32 0.0, %v471
      %v473 = vpop.f32.mrf.mxu0
      %v474 = vadd.f32 0.0, %v473
      %475 = vdwg.mxu0
      %476 = vmatpush.bf16.msra.mxu0 0
      %477 = vmatpush.bf16.msra.mxu0 0
      %478 = vmatpush.bf16.msra.mxu0 0
      %479 = vmatpush.bf16.msra.mxu0 0
      %480 = vmatpush.bf16.msra.mxu0 0
      %481 = vmatpush.bf16.msra.mxu0 0
      %482 = vmatpush.bf16.msra.mxu0 0
      %483 = vmatpush.bf16.msra.mxu0 %v445
      %484 = vmatmul.bf16.gmra.mxu0 %v431
      %v485 = vpop.f32.mrf.mxu0
      %v486 = vadd.f32 0.0, %v485
      %v487 = vpop.f32.mrf.mxu0
      %v488 = vadd.f32 0.0, %v487
      %489 = vmatmul.bf16.gmra.mxu0 %v434
      %v490 = vpop.f32.mrf.mxu0
      %v491 = vadd.f32 0.0, %v490
      %v492 = vpop.f32.mrf.mxu0
      %v493 = vadd.f32 0.0, %v492
      %494 = vmatmul.bf16.gmra.mxu0 %v437
      %v495 = vpop.f32.mrf.mxu0
      %v496 = vadd.f32 0.0, %v495
      %v497 = vpop.f32.mrf.mxu0
      %v498 = vadd.f32 0.0, %v497
      %499 = vmatmul.bf16.gmra.mxu0 %v440
      %v500 = vpop.f32.mrf.mxu0
      %v501 = vadd.f32 0.0, %v500
      %v502 = vpop.f32.mrf.mxu0
      %v503 = vadd.f32 0.0, %v502
      %504 = vdwg.mxu0
      %v505 = vmax.f32 %v457, %v462
      %v506 = vmax.f32 %v459, %v464
      %v507 = vmax.f32 %v505, %v467
      %v508 = vmax.f32 %v506, %v469
      %v509 = vmax.f32 %v507, %v472
      %v510 = vmax.f32 %v508, %v474
      %v511 = vmax.f32 %v509, %v510
      %v512 = vrot.slane %v511, 4
      %v513 = vmax.f32 %v511, %v512
      %v514 = vrot.slane %v513, 2
      %v515 = vmax.f32 %v513, %v514
      %v516 = vrot.slane %v515, 1
      %v517 = vmax.f32 %v515, %v516
      %v518 = vmax.f32 %v486, %v491
      %v519 = vmax.f32 %v488, %v493
      %v520 = vmax.f32 %v518, %v496
      %v521 = vmax.f32 %v519, %v498
      %v522 = vmax.f32 %v520, %v501
      %v523 = vmax.f32 %v521, %v503
      %v524 = vmax.f32 %v522, %v523
      %v525 = vrot.slane %v524, 4
      %v526 = vmax.f32 %v524, %v525
      %v527 = vrot.slane %v526, 2
      %v528 = vmax.f32 %v526, %v527
      %v529 = vrot.slane %v528, 1
      %v530 = vmax.f32 %v528, %v529
      %v531 = vsub.f32 %v457, %v517
      %v532 = vsub.f32 %v486, %v530
      %v533 = vsub.f32 %v459, %v517
      %v534 = vsub.f32 %v488, %v530
      %v535 = vsub.f32 %v462, %v517
      %v536 = vsub.f32 %v491, %v530
      %v537 = vsub.f32 %v464, %v517
      %v538 = vsub.f32 %v493, %v530
      %v539 = vsub.f32 %v467, %v517
      %v540 = vsub.f32 %v496, %v530
      %v541 = vsub.f32 %v469, %v517
      %v542 = vsub.f32 %v498, %v530
      %v543 = vsub.f32 %v472, %v517
      %v544 = vsub.f32 %v501, %v530
      %v545 = vsub.f32 %v474, %v517
      %v546 = vsub.f32 %v503, %v530
      %v547 = vpack.c.bf16 %v533, %v531
      %v548 = vpack.c.bf16 %v534, %v532
      %v549 = vpack.c.bf16 %v537, %v535
      %v550 = vpack.c.bf16 %v538, %v536
      %v551 = vpack.c.bf16 %v541, %v539
      %v552 = vpack.c.bf16 %v542, %v540
      %v553 = vpack.c.bf16 %v545, %v543
      %v554 = vpack.c.bf16 %v546, %v544
      %v555 = vunpack.c.l.bf16 %v547
      %v556 = vunpack.c.l.bf16 %v548
      %v557 = vunpack.c.h.bf16 %v547
      %v558 = vunpack.c.h.bf16 %v548
      %v559 = vunpack.c.l.bf16 %v549
      %v560 = vunpack.c.l.bf16 %v550
      %v561 = vunpack.c.h.bf16 %v549
      %v562 = vunpack.c.h.bf16 %v550
      %v563 = vunpack.c.l.bf16 %v551
      %v564 = vunpack.c.l.bf16 %v552
      %v565 = vunpack.c.h.bf16 %v551
      %v566 = vunpack.c.h.bf16 %v552
      %v567 = vunpack.c.l.bf16 %v553
      %v568 = vunpack.c.l.bf16 %v554
      %v569 = vunpack.c.h.bf16 %v553
      %v570 = vunpack.c.h.bf16 %v554
      %v571 = vmul.f32 %v555, 1.442695
      %v572 = vpow.pop %v571
      %v573 = vmul.f32 %v556, 1.442695
      %v574 = vpow.pop %v573
      %v575 = vmul.f32 %v557, 1.442695
      %v576 = vpow.pop %v575
      %v577 = vmul.f32 %v558, 1.442695
      %v578 = vpow.pop %v577
      %v579 = vmul.f32 %v559, 1.442695
      %v580 = vpow.pop %v579
      %v581 = vmul.f32 %v560, 1.442695
      %v582 = vpow.pop %v581
      %v583 = vmul.f32 %v561, 1.442695
      %v584 = vpow.pop %v583
      %v585 = vmul.f32 %v562, 1.442695
      %v586 = vpow.pop %v585
      %v587 = vmul.f32 %v563, 1.442695
      %v588 = vpow.pop %v587
      %v589 = vmul.f32 %v564, 1.442695
      %v590 = vpow.pop %v589
      %v591 = vmul.f32 %v565, 1.442695
      %v592 = vpow.pop %v591
      %v593 = vmul.f32 %v566, 1.442695
      %v594 = vpow.pop %v593
      %v595 = vmul.f32 %v567, 1.442695
      %v596 = vpow.pop %v595
      %v597 = vmul.f32 %v568, 1.442695
      %v598 = vpow.pop %v597
      %v599 = vmul.f32 %v569, 1.442695
      %v600 = vpow.pop %v599
      %v601 = vmul.f32 %v570, 1.442695
      %v602 = vpow.pop %v601
      %v603 = vpack.c.bf16 %v576, %v572
      %v604 = vpack.c.bf16 %v578, %v574
      %v605 = vpack.c.bf16 %v584, %v580
      %v606 = vpack.c.bf16 %v586, %v582
      %v607 = vpack.c.bf16 %v592, %v588
      %v608 = vpack.c.bf16 %v594, %v590
      %v609 = vpack.c.bf16 %v600, %v596
      %v610 = vpack.c.bf16 %v602, %v598
      %v611 = vunpack.c.l.bf16 %v603
      %v612 = vunpack.c.l.bf16 %v604
      %v613 = vunpack.c.h.bf16 %v603
      %v614 = vunpack.c.h.bf16 %v604
      %v615 = vunpack.c.l.bf16 %v605
      %v616 = vunpack.c.l.bf16 %v606
      %v617 = vunpack.c.h.bf16 %v605
      %v618 = vunpack.c.h.bf16 %v606
      %v619 = vunpack.c.l.bf16 %v607
      %v620 = vunpack.c.l.bf16 %v608
      %v621 = vunpack.c.h.bf16 %v607
      %v622 = vunpack.c.h.bf16 %v608
      %v623 = vunpack.c.l.bf16 %v609
      %v624 = vunpack.c.l.bf16 %v610
      %v625 = vunpack.c.h.bf16 %v609
      %v626 = vunpack.c.h.bf16 %v610
      %v627 = vadd.f32 %v611, %v613
      %v628 = vadd.f32 %v627, %v615
      %v629 = vadd.f32 %v628, %v617
      %v630 = vadd.f32 %v629, %v619
      %v631 = vadd.f32 %v630, %v621
      %v632 = vadd.f32 %v631, %v623
      %v633 = vadd.f32 %v632, %v625
      %v634 = vrot.slane %v633, 4
      %v635 = vadd.f32 %v633, %v634
      %v636 = vrot.slane %v635, 2
      %v637 = vadd.f32 %v635, %v636
      %v638 = vrot.slane %v637, 1
      %v639 = vadd.f32 %v637, %v638
      %v640 = vadd.f32 %v612, %v614
      %v641 = vadd.f32 %v640, %v616
      %v642 = vadd.f32 %v641, %v618
      %v643 = vadd.f32 %v642, %v620
      %v644 = vadd.f32 %v643, %v622
      %v645 = vadd.f32 %v644, %v624
      %v646 = vadd.f32 %v645, %v626
      %v647 = vrot.slane %v646, 4
      %v648 = vadd.f32 %v646, %v647
      %v649 = vrot.slane %v648, 2
      %v650 = vadd.f32 %v648, %v649
      %v651 = vrot.slane %v650, 1
      %v652 = vadd.f32 %v650, %v651
      %v653 = vld [vmem:[%s384] sm:$0xf]
      %v654 = vld [vmem:[%s384 + $0x4] sm:$0xf]
      %v657 = vunpack.c.l.b16 %v653
      %v658 = vunpack.c.l.b16 %v654
      %v659 = vpack.c.b16 %v658, %v657
      %vm660 = vcmask 523264
      %v662 = vsel %vm660, %v659, 0
      %664 = vmatpush.bf16.msra.mxu0 0
      %665 = vmatpush.bf16.msra.mxu0 0
      %666 = vmatpush.bf16.msra.mxu0 0
      %667 = vmatpush.bf16.msra.mxu0 0
      %668 = vmatpush.bf16.msra.mxu0 %v609
      %669 = vmatpush.bf16.msra.mxu0 %v607
      %670 = vmatpush.bf16.msra.mxu0 %v605
      %671 = vmatpush.bf16.msra.mxu0 %v603
      %672 = vmatmul.bf16.gmra.mxu0 %v662
      %v673 = vpop.f32.mrf.mxu0
      %v674 = vadd.f32 0.0, %v673
      %v675 = vpop.f32.mrf.mxu0
      %v676 = vadd.f32 0.0, %v675
      %677 = vdwg.mxu0
      %678 = vmatpush.bf16.msra.mxu0 0
      %679 = vmatpush.bf16.msra.mxu0 0
      %680 = vmatpush.bf16.msra.mxu0 0
      %681 = vmatpush.bf16.msra.mxu0 0
      %682 = vmatpush.bf16.msra.mxu0 %v610
      %683 = vmatpush.bf16.msra.mxu0 %v608
      %684 = vmatpush.bf16.msra.mxu0 %v606
      %685 = vmatpush.bf16.msra.mxu0 %v604
      %686 = vmatmul.bf16.gmra.mxu0 %v662
      %v687 = vpop.f32.mrf.mxu0
      %v688 = vadd.f32 0.0, %v687
      %v689 = vpop.f32.mrf.mxu0
      %v690 = vadd.f32 0.0, %v689
      %691 = vdwg.mxu0
      %v692 = vrcp.pop %v639
      %v693 = vrcp.pop %v652
      %v694 = vmul.f32 %v674, %v692
      %v695 = vmul.f32 %v688, %v693
      %v696 = vmul.f32 %v676, %v692
      %v697 = vmul.f32 %v690, %v693
      %v698 = vld [vmem:[%s5] sm:$0xf]
      %v699 = vld [vmem:[%s5 + $0x4] sm:$0xf]
      %v700 = vld [vmem:[%s5 + $0x8] sm:$0xf]
      %v701 = vld [vmem:[%s5 + $0xc] sm:$0xf]
      %v702 = vpack.c.bf16 %v696, %v694
      %v703 = vpack.c.bf16 %v697, %v695
      %v704 = vld [vmem:[%s6] sm:$0xff]
      %v705 = vld [vmem:[%s6 + $0x8] sm:$0xff]
      %v706 = vld [vmem:[%s6 + $0x10] sm:$0xff]
      %v707 = vld [vmem:[%s6 + $0x18] sm:$0xff]
      %709 = vset.pattern.permute.xlu0 0
      %710 = vperm.xlu0 %709, %v704
      %v711 = vpop.permute.xlu0 %710
      %714 = vset.pattern.permute.xlu0 0
      %715 = vperm.xlu0 %714, %v705
      %v716 = vpop.permute.xlu0 %715
      %719 = vset.pattern.permute.xlu0 0
      %720 = vperm.xlu0 %719, %v706
      %v721 = vpop.permute.xlu0 %720
      %724 = vset.pattern.permute.xlu0 0
      %725 = vperm.xlu0 %724, %v707
      %v726 = vpop.permute.xlu0 %725
      %v732 = vunpack.c.l.b16 %v698
      %v733 = vunpack.c.l.b16 %v699
      %v734 = vunpack.c.l.b16 %v700
      %v735 = vunpack.c.l.b16 %v701
      %v736 = vpack.c.b16 %v733, %v732
      %v737 = vpack.c.b16 %v735, %v734
      %vm738 = vcmask 130048
      %v740 = vsel %vm738, %v736, 0
      %v743 = vsel %vm738, %v737, 0
      %745 = vmatpush.bf16.msra.mxu0 0
      %746 = vmatpush.bf16.msra.mxu0 0
      %747 = vmatpush.bf16.msra.mxu0 0
      %748 = vmatpush.bf16.msra.mxu0 0
      %749 = vmatpush.bf16.msra.mxu0 0
      %750 = vmatpush.bf16.msra.mxu0 0
      %751 = vmatpush.bf16.msra.mxu0 0
      %752 = vmatpush.bf16.msra.mxu0 %v702
      %753 = vmatmul.bf16.gmra.mxu0 %v740
      %v754 = vpop.f32.mrf.mxu0
      %v755 = vadd.f32 %v711, %v754
      %v756 = vpop.f32.mrf.mxu0
      %v757 = vadd.f32 %v716, %v756
      %758 = vmatmul.bf16.gmra.mxu0 %v743
      %v759 = vpop.f32.mrf.mxu0
      %v760 = vadd.f32 %v721, %v759
      %v761 = vpop.f32.mrf.mxu0
      %v762 = vadd.f32 %v726, %v761
      %763 = vdwg.mxu0
      %764 = vmatpush.bf16.msra.mxu0 0
      %765 = vmatpush.bf16.msra.mxu0 0
      %766 = vmatpush.bf16.msra.mxu0 0
      %767 = vmatpush.bf16.msra.mxu0 0
      %768 = vmatpush.bf16.msra.mxu0 0
      %769 = vmatpush.bf16.msra.mxu0 0
      %770 = vmatpush.bf16.msra.mxu0 0
      %771 = vmatpush.bf16.msra.mxu0 %v703
      %772 = vmatmul.bf16.gmra.mxu0 %v740
      %v773 = vpop.f32.mrf.mxu0
      %v774 = vadd.f32 %v711, %v773
      %v775 = vpop.f32.mrf.mxu0
      %v776 = vadd.f32 %v716, %v775
      %777 = vmatmul.bf16.gmra.mxu0 %v743
      %v778 = vpop.f32.mrf.mxu0
      %v779 = vadd.f32 %v721, %v778
      %v780 = vpop.f32.mrf.mxu0
      %v781 = vadd.f32 %v726, %v780
      %782 = vdwg.mxu0
      %s783 = sld [smem:[#allocation2]]
      %v784 = vstv %s783
      %v785 = vmul.f32 %v784, %v755
      %v786 = vmul.f32 %v784, %v774
      %v787 = vmul.f32 %v784, %v757
      %v788 = vmul.f32 %v784, %v776
      %v789 = vmul.f32 %v784, %v760
      %v790 = vmul.f32 %v784, %v779
      %v791 = vmul.f32 %v784, %v762
      %v792 = vmul.f32 %v784, %v781
      %v793 = vld [vmem:[%s363] sm:$0xff]
      %v794 = vld [vmem:[%s363 + $0x8] sm:$0xff]
      %v795 = vld [vmem:[%s363 + $0x10] sm:$0xff]
      %v796 = vld [vmem:[%s363 + $0x18] sm:$0xff]
      %v797 = vld [vmem:[%s363 + $0x20] sm:$0xff]
      %v798 = vld [vmem:[%s363 + $0x28] sm:$0xff]
      %v799 = vld [vmem:[%s363 + $0x30] sm:$0xff]
      %v800 = vld [vmem:[%s363 + $0x38] sm:$0xff]
      %v801 = vadd.f32 %v785, %v793
      %v802 = vadd.f32 %v786, %v794
      %v803 = vadd.f32 %v787, %v795
      %v804 = vadd.f32 %v788, %v796
      %v805 = vadd.f32 %v789, %v797
      %v806 = vadd.f32 %v790, %v798
      %v807 = vadd.f32 %v791, %v799
      %v808 = vadd.f32 %v792, %v800
      %809 = vst [vmem:[%s393] sm:$0xff] %v801
      %810 = vst [vmem:[%s393 + $0x8] sm:$0xff] %v802
      %811 = vst [vmem:[%s393 + $0x10] sm:$0xff] %v803
      %812 = vst [vmem:[%s393 + $0x18] sm:$0xff] %v804
      %813 = vst [vmem:[%s393 + $0x20] sm:$0xff] %v805
      %814 = vst [vmem:[%s393 + $0x28] sm:$0xff] %v806
      %815 = vst [vmem:[%s393 + $0x30] sm:$0xff] %v807
      %816 = vst [vmem:[%s393 + $0x38] sm:$0xff] %v808
      %s817 = smul.u32 2, %s24
      %p818 = scmp.lt.s32.totalorder %s23, 1
      %s819 = scalar_select %p818, %s23, 1
      %p820 = scmp.lt.s32.totalorder %s817, 1
      %s821 = scalar_select %p820, %s817, 1
      %s822 = smul.addr %s819, 8
      %s823 = sadd.s32 %s821, %s822
      %s824 = smul.addr %s823, 8
      %s825 = scalar_lea.vmem %s7, %s824
      // Predicated region
      $region49: #{attention_forward.3} parent=47 // pred_check
        %p826 = pneg %p222
      $region50: #{attention_forward.3} parent=47 // pred_check_branch
        %828 = sbr.rel (%p826) target = $region52
      $region51: #{attention_forward.3} parent=47 // pred_region
        %s829 = smul.u32 2, %s24
      $region52: #{attention_forward.3} parent=47 // pred_fallthru
        _
    $region48: #{attention_forward.3} parent=5 // pred_fallthru
      _
    %p830 = scmp.le.s32.totalorder 2, %s14
    // Predicated region
    $region53: #{attention_forward.3} parent=5 // pred_check
      %p831 = pneg %p830
    $region54: #{attention_forward.3} parent=5 // pred_check_branch
      %833 = sbr.rel (%p831) target = $region56
    $region55: #{attention_forward.3} parent=5 // pred_region
      %s834 = ssub.s32 %s14, 2
      // Predicated region
      $region57: #{attention_forward.3} parent=55 // pred_check
        %p835 = pneg %p228
      $region58: #{attention_forward.3} parent=55 // pred_check_branch
        %837 = sbr.rel (%p835) target = $region60
      $region59: #{attention_forward.3} parent=55 // pred_region
        %s838 = smul.u32 2, %s26
        %p839 = scmp.lt.s32.totalorder %s25, 1
        %s840 = scalar_select %p839, %s25, 1
        %p841 = scmp.lt.s32.totalorder %s838, 1
        %s842 = scalar_select %p841, %s838, 1
        %s843 = smul.addr %s840, 8
        %s844 = sadd.s32 %s842, %s843
        %s845 = smul.addr %s844, 8
        %s846 = scalar_lea.vmem %s7, %s845
      $region60: #{attention_forward.3} parent=55 // pred_fallthru
        _
    $region56: #{attention_forward.3} parent=5 // pred_fallthru
      _
  $region6: #{attention_forward.3} parent=0 // loop_footer
    %s18 = sadd.s32 1, %s14
  $region7: #{attention_forward.3} parent=0 // loop_footer_branch
    %13 = sbr.rel target = $region3
  $region8: #{attention_forward.3} parent=0 // loop_exit
    _

// kernel: attention_forward.2
$region0: #{attention_forward.2}
  #allocation0 [shape = 'u32[]', space=smem, size = 0x4, offset = 0x4, fixed_abs, tag = 'smem constant byte address 0x4 - core index']
  #allocation1 [shape = 'u32[72,128]{1,0:T(1,128)}', space=vmem, size = 0x9000, scoped, tag = 'internal scratch']
  %s0 = inlined_call_operand.vmem [shape: f32[2,32,256], index: 0, kind: input, shape index: {}]
  %s1 = inlined_call_operand.vmem [shape: bf16[24,32], index: 1, kind: input, shape index: {}]
  %s2 = inlined_call_operand.vmem [shape: f32[24,1], index: 2, kind: input, shape index: {}]
  %s3 = inlined_call_operand.vmem [shape: bf16[2,4,256], index: 3, kind: output, shape index: {0}]
  %s4 = inlined_call_operand.vmem [shape: bf16[2,64,4], index: 4, kind: output, shape index: {1}]
  %s5 = inlined_call_operand.vmem [shape: bf16[2,16,64], index: 5, kind: output, shape index: {2}]
  %6 = xla_tuple %s3, %s4, %s5
  %s7 = sld [smem:[#allocation0]]
  $region61: #{attention_forward.2} parent=0
    _
  %s9 = ssub.s32 1, %s7
  %s10 = scalar_select 0, %s9, %s7
  loop: start=0, step=1, limit=4
  $region2: #{attention_forward.2} parent=0 // loop_pre_header
    _
  $region3: #{attention_forward.2} parent=0 // loop_header
    %s12 = sphi 0, %s16
    %p13 = scmp.ge.s32.totalorder %s12, 4
    %s19 = sphi 0, %s31
    %s20 = sphi 0, %s27
    %s21 = sphi 0, %s19
    %s22 = sphi 0, %s20
    %s23 = sphi 0, %s21
    %s24 = sphi 0, %s22
    %s36 = sphi 0, %s38
    %s39 = sphi 0, %s36
    %s40 = sphi 0, %s39
    %s56 = sphi 0, %s40
    %s60 = sphi 0, %s60
    %s62 = sphi 0, %s60
    %s63 = sphi 0, %s62
    %s77 = sphi 0, %s63
    %s81 = sphi 0, %s81
    %s83 = sphi 0, %s81
    %s84 = sphi 0, %s83
    %s98 = sphi 0, %s84
    %s106 = sphi 0, %s108
    %s109 = sphi 0, %s106
    %s110 = sphi 0, %s109
    %s126 = sphi 0, %s110
    %s134 = sphi 0, %s136
    %s137 = sphi 0, %s134
    %s138 = sphi 0, %s137
    %s154 = sphi 0, %s138
    %s162 = sphi 0, %s164
    %s165 = sphi 0, %s162
    %s166 = sphi 0, %s165
    %s182 = sphi 0, %s166
  $region4: #{attention_forward.2} parent=0 // loop_header_branch
    %15 = sbr.rel (%p13) target = $region8
  $region5: #{attention_forward.2} parent=0 // loop_body
    %s17 = ssub.s32 %s12, 1
    %s18 = ssub.s32 %s12, 2
    %s25 = sadd.s32 1, %s20
    %p26 = scmp.ge.s32.totalorder %s25, 1
    %s27 = scalar_select %p26, 0, %s25
    %s28 = sadd.s32 1, %s19
    %s29 = scalar_select %p26, %s28, %s19
    %p30 = scmp.ge.s32.totalorder %s29, 2
    %s31 = scalar_select %p30, 0, %s29
    %s32 = ssub.s32 %s19, %s31
    %s33 = ssub.s32 %s20, %s27
    %s34 = sor.u32 %s32, %s33
    %p35 = scmp.eq.s32.totalorder %s34, 0
    %s37 = sadd.s32 %s36, 1
    %s38 = scalar_select %p35, %s36, %s37
    %p41 = pneg %p35
    %p42 = scmp.eq.s32.totalorder %s12, 1
    %p43 = por %p41, %p42
    %p44 = scmp.ne.s32.totalorder %s36, %s39
    %p45 = scmp.eq.s32.totalorder %s12, 0
    %p46 = por %p44, %p45
    %p47 = scmp.ne.s32.totalorder %s36, %s39
    %p48 = scmp.eq.s32.totalorder %s17, 1
    %p49 = por %p47, %p48
    %p50 = scmp.ne.s32.totalorder %s39, %s40
    %p51 = scmp.eq.s32.totalorder %s17, 0
    %p52 = por %p50, %p51
    %p53 = scmp.ne.s32.totalorder %s39, %s40
    %p54 = scmp.eq.s32.totalorder %s18, 1
    %p55 = por %p53, %p54
    %p57 = scmp.ne.s32.totalorder %s40, %s56
    %p58 = scmp.eq.s32.totalorder %s18, 0
    %p59 = por %p57, %p58
    %s61 = sadd.s32 %s60, 1
    %p64 = scmp.eq.s32.totalorder %s12, 1
    %p65 = scmp.ne.s32.totalorder %s60, %s62
    %p66 = scmp.eq.s32.totalorder %s12, 0
    %p67 = por %p65, %p66
    %p68 = scmp.ne.s32.totalorder %s60, %s62
    %p69 = scmp.eq.s32.totalorder %s17, 1
    %p70 = por %p68, %p69
    %p71 = scmp.ne.s32.totalorder %s62, %s63
    %p72 = scmp.eq.s32.totalorder %s17, 0
    %p73 = por %p71, %p72
    %p74 = scmp.ne.s32.totalorder %s62, %s63
    %p75 = scmp.eq.s32.totalorder %s18, 1
    %p76 = por %p74, %p75
    %p78 = scmp.ne.s32.totalorder %s63, %s77
    %p79 = scmp.eq.s32.totalorder %s18, 0
    %p80 = por %p78, %p79
    %s82 = sadd.s32 %s81, 1
    %p85 = scmp.eq.s32.totalorder %s12, 1
    %p86 = scmp.ne.s32.totalorder %s81, %s83
    %p87 = scmp.eq.s32.totalorder %s12, 0
    %p88 = por %p86, %p87
    %p89 = scmp.ne.s32.totalorder %s81, %s83
    %p90 = scmp.eq.s32.totalorder %s17, 1
    %p91 = por %p89, %p90
    %p92 = scmp.ne.s32.totalorder %s83, %s84
    %p93 = scmp.eq.s32.totalorder %s17, 0
    %p94 = por %p92, %p93
    %p95 = scmp.ne.s32.totalorder %s83, %s84
    %p96 = scmp.eq.s32.totalorder %s18, 1
    %p97 = por %p95, %p96
    %p99 = scmp.ne.s32.totalorder %s84, %s98
    %p100 = scmp.eq.s32.totalorder %s18, 0
    %p101 = por %p99, %p100
    %s102 = ssub.s32 %s19, %s31
    %s103 = ssub.s32 %s20, %s27
    %s104 = sor.u32 %s102, %s103
    %p105 = scmp.eq.s32.totalorder %s104, 0
    %s107 = sadd.s32 %s106, 1
    %s108 = scalar_select %p105, %s106, %s107
    %p111 = pneg %p105
    %p112 = scmp.eq.s32.totalorder %s12, 1
    %p113 = por %p111, %p112
    %p114 = scmp.ne.s32.totalorder %s106, %s109
    %p115 = scmp.eq.s32.totalorder %s12, 0
    %p116 = por %p114, %p115
    %p117 = scmp.ne.s32.totalorder %s106, %s109
    %p118 = scmp.eq.s32.totalorder %s17, 1
    %p119 = por %p117, %p118
    %p120 = scmp.ne.s32.totalorder %s109, %s110
    %p121 = scmp.eq.s32.totalorder %s17, 0
    %p122 = por %p120, %p121
    %p123 = scmp.ne.s32.totalorder %s109, %s110
    %p124 = scmp.eq.s32.totalorder %s18, 1
    %p125 = por %p123, %p124
    %p127 = scmp.ne.s32.totalorder %s110, %s126
    %p128 = scmp.eq.s32.totalorder %s18, 0
    %p129 = por %p127, %p128
    %s130 = ssub.s32 %s19, %s31
    %s131 = ssub.s32 %s20, %s27
    %s132 = sor.u32 %s130, %s131
    %p133 = scmp.eq.s32.totalorder %s132, 0
    %s135 = sadd.s32 %s134, 1
    %s136 = scalar_select %p133, %s134, %s135
    %p139 = pneg %p133
    %p140 = scmp.eq.s32.totalorder %s12, 1
    %p141 = por %p139, %p140
    %p142 = scmp.ne.s32.totalorder %s134, %s137
    %p143 = scmp.eq.s32.totalorder %s12, 0
    %p144 = por %p142, %p143
    %p145 = scmp.ne.s32.totalorder %s134, %s137
    %p146 = scmp.eq.s32.totalorder %s17, 1
    %p147 = por %p145, %p146
    %p148 = scmp.ne.s32.totalorder %s137, %s138
    %p149 = scmp.eq.s32.totalorder %s17, 0
    %p150 = por %p148, %p149
    %p151 = scmp.ne.s32.totalorder %s137, %s138
    %p152 = scmp.eq.s32.totalorder %s18, 1
    %p153 = por %p151, %p152
    %p155 = scmp.ne.s32.totalorder %s138, %s154
    %p156 = scmp.eq.s32.totalorder %s18, 0
    %p157 = por %p155, %p156
    %s158 = ssub.s32 %s19, %s31
    %s159 = ssub.s32 %s20, %s27
    %s160 = sor.u32 %s158, %s159
    %p161 = scmp.eq.s32.totalorder %s160, 0
    %s163 = sadd.s32 %s162, 1
    %s164 = scalar_select %p161, %s162, %s163
    %p167 = pneg %p161
    %p168 = scmp.eq.s32.totalorder %s12, 1
    %p169 = por %p167, %p168
    %p170 = scmp.ne.s32.totalorder %s162, %s165
    %p171 = scmp.eq.s32.totalorder %s12, 0
    %p172 = por %p170, %p171
    %p173 = scmp.ne.s32.totalorder %s162, %s165
    %p174 = scmp.eq.s32.totalorder %s17, 1
    %p175 = por %p173, %p174
    %p176 = scmp.ne.s32.totalorder %s165, %s166
    %p177 = scmp.eq.s32.totalorder %s17, 0
    %p178 = por %p176, %p177
    %p179 = scmp.ne.s32.totalorder %s165, %s166
    %p180 = scmp.eq.s32.totalorder %s18, 1
    %p181 = por %p179, %p180
    %p183 = scmp.ne.s32.totalorder %s166, %s182
    %p184 = scmp.eq.s32.totalorder %s18, 0
    %p185 = por %p183, %p184
    %p186 = scmp.le.s32.totalorder 1, %s12
    %p187 = scmp.lt.s32.totalorder %s12, 3
    %p188 = pnand %p186, %p187
    %p189 = pneg %p188
    // Predicated region
    $region9: #{attention_forward.2} parent=5 // pred_check
      _
    $region10: #{attention_forward.2} parent=5 // pred_check_branch
      %191 = sbr.rel (%p188) target = $region12
    $region11: #{attention_forward.2} parent=5 // pred_region
      %s192 = ssub.s32 %s12, 1
      // Predicated region
      $region13: #{attention_forward.2} parent=11 // pred_check
        %p193 = pneg %p73
      $region14: #{attention_forward.2} parent=11 // pred_check_branch
        %195 = sbr.rel (%p193) target = $region16
      $region15: #{attention_forward.2} parent=11 // pred_region
        _
      $region16: #{attention_forward.2} parent=11 // pred_fallthru
        _
      // Predicated region
      $region17: #{attention_forward.2} parent=11 // pred_check
        %p196 = pneg %p94
      $region18: #{attention_forward.2} parent=11 // pred_check_branch
        %198 = sbr.rel (%p196) target = $region20
      $region19: #{attention_forward.2} parent=11 // pred_region
        _
      $region20: #{attention_forward.2} parent=11 // pred_fallthru
        _
    $region12: #{attention_forward.2} parent=5 // pred_fallthru
      _
    %p199 = scmp.lt.s32.totalorder %s12, 2
    // Predicated region
    $region21: #{attention_forward.2} parent=5 // pred_check
      %p200 = pneg %p199
    $region22: #{attention_forward.2} parent=5 // pred_check_branch
      %202 = sbr.rel (%p200) target = $region24
    $region23: #{attention_forward.2} parent=5 // pred_region
      // Predicated region
      $region25: #{attention_forward.2} parent=23 // pred_check
        %p203 = pneg %p46
      $region26: #{attention_forward.2} parent=23 // pred_check_branch
        %205 = sbr.rel (%p203) target = $region28
      $region27: #{attention_forward.2} parent=23 // pred_region
        %s206 = smul.u32 2, %s20
        %p207 = scmp.lt.s32.totalorder %s19, 1
        %s208 = scalar_select %p207, %s19, 1
        %p209 = scmp.lt.s32.totalorder %s206, 1
        %s210 = scalar_select %p209, %s206, 1
        %s211 = smul.addr %s208, 8
        %s212 = sadd.s32 %s210, %s211
        %s213 = smul.addr %s212, 8
        %s214 = scalar_lea.vmem %s0, %s213
        %s215 = smul.u32 2, %s20
      $region28: #{attention_forward.2} parent=23 // pred_fallthru
        _
    $region24: #{attention_forward.2} parent=5 // pred_fallthru
      _
    %p216 = scmp.le.s32.totalorder 1, %s12
    %p217 = scmp.lt.s32.totalorder %s12, 3
    %p218 = pnand %p216, %p217
    %p219 = pneg %p218
    // Predicated region
    $region29: #{attention_forward.2} parent=5 // pred_check
      _
    $region30: #{attention_forward.2} parent=5 // pred_check_branch
      %221 = sbr.rel (%p218) target = $region32
    $region31: #{attention_forward.2} parent=5 // pred_region
      %s222 = ssub.s32 %s12, 1
      %s223 = smul.u32 2, %s22
      %p224 = scmp.lt.s32.totalorder %s21, 1
      %s225 = scalar_select %p224, %s21, 1
      %p226 = scmp.lt.s32.totalorder %s223, 1
      %s227 = scalar_select %p226, %s223, 1
      %s228 = smul.addr %s225, 8
      %s229 = sadd.s32 %s227, %s228
      %s230 = smul.addr %s229, 8
      %s231 = scalar_lea.vmem %s0, %s230
      %p232 = pneg %p52
      %p233 = pneg %p49
      %p234 = pneg %p73
      %p235 = pneg %p70
      %p236 = pneg %p94
      %p237 = pneg %p91
      %p238 = pneg %p122
      %p239 = pneg %p119
      %s240 = smul.u32 2, %s22
      %p241 = scmp.lt.s32.totalorder %s21, 1
      %s242 = scalar_select %p241, %s21, 1
      %p243 = scmp.lt.s32.totalorder %s240, 1
      %s244 = scalar_select %p243, %s240, 1
      %s245 = smul.addr %s242, 2
      %s246 = sadd.s32 %s244, %s245
      %s247 = smul.addr %s246, 2
      %s248 = scalar_lea.vmem %s3, %s247
      %p249 = pneg %p150
      %p250 = pneg %p147
      %s251 = smul.u32 8, %s22
      %p252 = scmp.lt.s32.totalorder %s21, 1
      %s253 = scalar_select %p252, %s21, 1
      %p254 = scmp.lt.s32.totalorder %s251, 7
      %s255 = scalar_select %p254, %s251, 7
      %s256 = smul.addr %s253, 8
      %s257 = sadd.s32 %s255, %s256
      %s258 = smul.addr %s257, 4
      %s259 = scalar_lea.vmem %s4, %s258
      %p260 = pneg %p178
      %p261 = pneg %p175
      %p262 = scmp.lt.s32.totalorder %s21, 1
      %s263 = scalar_select %p262, %s21, 1
      %p264 = scmp.lt.s32.totalorder %s22, 0
      %s265 = scalar_select %p264, %s22, 0
      %s266 = smul.addr %s263, 2
      %s267 = sadd.s32 %s265, %s266
      %s268 = smul.addr %s267, 4
      %s269 = scalar_lea.vmem %s5, %s268
      %s270 = smul.u32 2, %s22
      %p271 = scmp.lt.s32.totalorder %s21, 1
      %s272 = scalar_select %p271, %s21, 1
      %p273 = scmp.lt.s32.totalorder %s270, 1
      %s274 = scalar_select %p273, %s270, 1
      %s275 = smul.addr %s272, 8
      %s276 = sadd.s32 %s274, %s275
      %s277 = smul.addr %s276, 8
      %s278 = scalar_lea.vmem %s0, %s277
      %s279 = smul.u32 2, %s22
      %s280 = smul.u32 2, %s22
      %p281 = scmp.lt.s32.totalorder %s21, 1
      %s282 = scalar_select %p281, %s21, 1
      %p283 = scmp.lt.s32.totalorder %s280, 1
      %s284 = scalar_select %p283, %s280, 1
      %s285 = smul.addr %s282, 2
      %s286 = sadd.s32 %s284, %s285
      %s287 = smul.addr %s286, 2
      %s288 = scalar_lea.vmem %s3, %s287
      %s289 = smul.u32 2, %s22
      %s290 = smul.u32 8, %s22
      %p291 = scmp.lt.s32.totalorder %s21, 1
      %s292 = scalar_select %p291, %s21, 1
      %p293 = scmp.lt.s32.totalorder %s290, 7
      %s294 = scalar_select %p293, %s290, 7
      %s295 = smul.addr %s292, 8
      %s296 = sadd.s32 %s294, %s295
      %s297 = smul.addr %s296, 4
      %s298 = scalar_lea.vmem %s4, %s297
      %s299 = smul.u32 8, %s22
      %p300 = scmp.lt.s32.totalorder %s21, 1
      %s301 = scalar_select %p300, %s21, 1
      %p302 = scmp.lt.s32.totalorder %s22, 0
      %s303 = scalar_select %p302, %s22, 0
      %s304 = smul.addr %s301, 2
      %s305 = sadd.s32 %s303, %s304
      %s306 = smul.addr %s305, 4
      %s307 = scalar_lea.vmem %s5, %s306
      %v309 = vld [vmem:[%s278] sm:$0xff]
      %v310 = vld [vmem:[%s278 + $0x8] sm:$0xff]
      %v311 = vld [vmem:[%s278 + $0x10] sm:$0xff]
      %v312 = vld [vmem:[%s278 + $0x18] sm:$0xff]
      %v313 = vld [vmem:[%s278 + $0x20] sm:$0xff]
      %v314 = vld [vmem:[%s278 + $0x28] sm:$0xff]
      %v315 = vld [vmem:[%s278 + $0x30] sm:$0xff]
      %v316 = vld [vmem:[%s278 + $0x38] sm:$0xff]
      %v317 = vpack.c.bf16 %v311, %v309
      %v318 = vpack.c.bf16 %v312, %v310
      %v319 = vpack.c.bf16 %v315, %v313
      %v320 = vpack.c.bf16 %v316, %v314
      %v321 = vld [vmem:[%s1] sm:$0xf]
      %v322 = vld [vmem:[%s1 + $0x4] sm:$0xf]
      %v323 = vld [vmem:[%s1 + $0x8] sm:$0xf]
      %v324 = vld [vmem:[%s2] sm:$0xff]
      %v325 = vld [vmem:[%s2 + $0x8] sm:$0xff]
      %v326 = vld [vmem:[%s2 + $0x10] sm:$0xff]
      %328 = vset.pattern.permute.xlu0 0
      %329 = vperm.xlu0 %328, %v324
      %v330 = vpop.permute.xlu0 %329
      %333 = vset.pattern.permute.xlu0 0
      %334 = vperm.xlu0 %333, %v325
      %v335 = vpop.permute.xlu0 %334
      %338 = vset.pattern.permute.xlu0 0
      %339 = vperm.xlu0 %338, %v326
      %v340 = vpop.permute.xlu0 %339
      %v345 = vunpack.c.l.b16 %v321
      %v346 = vunpack.c.l.b16 %v322
      %v347 = vunpack.c.l.b16 %v323
      %v348 = vpack.c.b16 %v346, %v345
      %v349 = vpack.c.b16 %v347, %v347
      %vm350 = vcmask 261120
      %v352 = vsel %vm350, %v348, 0
      %v355 = vsel %vm350, %v349, 0
      %357 = vmatpush.bf16.msra.mxu0 0
      %358 = vmatpush.bf16.msra.mxu0 0
      %359 = vmatpush.bf16.msra.mxu0 0
      %360 = vmatpush.bf16.msra.mxu0 0
      %361 = vmatpush.bf16.msra.mxu0 0
      %362 = vmatpush.bf16.msra.mxu0 0
      %363 = vmatpush.bf16.msra.mxu0 %v319
      %364 = vmatpush.bf16.msra.mxu0 %v317
      %365 = vmatmul.bf16.gmra.mxu0 %v352
      %v366 = vpop.f32.mrf.mxu0
      %v367 = vadd.f32 %v330, %v366
      %v368 = vpop.f32.mrf.mxu0
      %v369 = vadd.f32 %v335, %v368
      %370 = vmatmul.bf16.gmra.mxu0 %v355
      %v371 = vpop.f32.mrf.mxu0
      %v372 = vadd.f32 %v340, %v371
      %v373 = vpop.f32.mrf.mxu0
      %374 = vdwg.mxu0
      %375 = vmatpush.bf16.msra.mxu0 0
      %376 = vmatpush.bf16.msra.mxu0 0
      %377 = vmatpush.bf16.msra.mxu0 0
      %378 = vmatpush.bf16.msra.mxu0 0
      %379 = vmatpush.bf16.msra.mxu0 0
      %380 = vmatpush.bf16.msra.mxu0 0
      %381 = vmatpush.bf16.msra.mxu0 %v320
      %382 = vmatpush.bf16.msra.mxu0 %v318
      %383 = vmatmul.bf16.gmra.mxu0 %v352
      %v384 = vpop.f32.mrf.mxu0
      %v385 = vadd.f32 %v330, %v384
      %v386 = vpop.f32.mrf.mxu0
      %v387 = vadd.f32 %v335, %v386
      %388 = vmatmul.bf16.gmra.mxu0 %v355
      %v389 = vpop.f32.mrf.mxu0
      %v390 = vadd.f32 %v340, %v389
      %v391 = vpop.f32.mrf.mxu0
      %392 = vdwg.mxu0
      %v393 = vpack.c.bf16 %v385, %v367
      %v395 = vrot.slane %v393, 2
      %vm396 = vcmask 1041408
      %v399 = vsel %vm396, %v393, %v395
      %401 = vst [vmem:[%s288] sm:$0xf] %v399
      %vm408 = vcmask 1043456
      %v409 = vrot.slane %v367, 4
      %v410 = vrot.slane %v369, 4
      %v411 = vsel %vm408, %v409, %v410
      %v412 = vrot.slane %v385, 4
      %v413 = vrot.slane %v387, 4
      %v414 = vsel %vm408, %v412, %v413
      %v415 = vrot.slane %v372, 4
      %v416 = vsel %vm408, %v410, %v415
      %v417 = vrot.slane %v390, 4
      %v418 = vsel %vm408, %v413, %v417
      %425 = vrot.lane.b32.xlu0 %v411, 127
      %v426 = vpop.permute.xlu0 %425
      %427 = vrot.lane.b32.xlu0 %v416, 127
      %v428 = vpop.permute.xlu0 %427
      %429 = vrot.lane.b32.xlu0 %v415, 127
      %v430 = vpop.permute.xlu0 %429
      %431 = vrot.lane.b32.xlu0 %v414, 127
      %v432 = vpop.permute.xlu0 %431
      %433 = vrot.lane.b32.xlu0 %v418, 127
      %v434 = vpop.permute.xlu0 %433
      %435 = vrot.lane.b32.xlu0 %v417, 127
      %v436 = vpop.permute.xlu0 %435
      %v437 = vlaneseq
      %v438 = vand.u32 %v437, 127
      %vm439 = vcmp.lt.s32.totalorder %v438, 127
      %v440 = vsel %vm439, %v426, %v432
      %v441 = vsel %vm439, %v428, %v434
      %v442 = vsel %vm439, %v430, %v436
      %v443 = vsel %vm439, %v432, %v426
      %v444 = vsel %vm439, %v434, %v428
      %v445 = vsel %vm439, %v436, %v430
      %v452 = vrot.slane %v440, 4
      %v453 = vrot.slane %v443, 4
      %v454 = vrot.slane %v441, 4
      %v455 = vsel %vm408, %v452, %v454
      %v456 = vrot.slane %v444, 4
      %v457 = vsel %vm408, %v453, %v456
      %v458 = vrot.slane %v442, 4
      %v459 = vsel %vm408, %v454, %v458
      %v460 = vrot.slane %v445, 4
      %v461 = vsel %vm408, %v456, %v460
      %v468 = vmax.f32 %v367, %v452
      %v469 = vmax.f32 %v385, %v453
      %v470 = vmax.f32 %v369, %v455
      %v471 = vmax.f32 %v387, %v457
      %v472 = vmax.f32 %v372, %v459
      %v473 = vmax.f32 %v390, %v461
      %v480 = vrot.slane %v468, 4
      %v481 = vrot.slane %v470, 4
      %v482 = vsel %vm408, %v480, %v481
      %v483 = vrot.slane %v469, 4
      %v484 = vrot.slane %v471, 4
      %v485 = vsel %vm408, %v483, %v484
      %v486 = vrot.slane %v472, 4
      %v487 = vsel %vm408, %v481, %v486
      %v488 = vrot.slane %v473, 4
      %v489 = vsel %vm408, %v484, %v488
      %496 = vrot.lane.b32.xlu0 %v482, 112
      %v497 = vpop.permute.xlu0 %496
      %498 = vrot.lane.b32.xlu0 %v487, 112
      %v499 = vpop.permute.xlu0 %498
      %500 = vrot.lane.b32.xlu0 %v486, 112
      %v501 = vpop.permute.xlu0 %500
      %502 = vrot.lane.b32.xlu0 %v485, 112
      %v503 = vpop.permute.xlu0 %502
      %504 = vrot.lane.b32.xlu0 %v489, 112
      %v505 = vpop.permute.xlu0 %504
      %506 = vrot.lane.b32.xlu0 %v488, 112
      %v507 = vpop.permute.xlu0 %506
      %vm508 = vcmp.lt.s32.totalorder %v438, 112
      %v509 = vsel %vm508, %v497, %v503
      %v510 = vsel %vm508, %v499, %v505
      %v511 = vsel %vm508, %v501, %v507
      %v512 = vsel %vm508, %v503, %v497
      %v513 = vsel %vm508, %v505, %v499
      %v514 = vsel %vm508, %v507, %v501
      %v521 = vrot.slane %v509, 4
      %v522 = vrot.slane %v512, 4
      %v523 = vrot.slane %v510, 4
      %v524 = vsel %vm408, %v521, %v523
      %v525 = vrot.slane %v513, 4
      %v526 = vsel %vm408, %v522, %v525
      %v527 = vrot.slane %v511, 4
      %v528 = vsel %vm408, %v523, %v527
      %v529 = vrot.slane %v514, 4
      %v530 = vsel %vm408, %v525, %v529
      %v537 = vmax.f32 %v468, %v521
      %v538 = vmax.f32 %v469, %v522
      %v539 = vmax.f32 %v470, %v524
      %v540 = vmax.f32 %v471, %v526
      %v541 = vmax.f32 %v472, %v528
      %v542 = vmax.f32 %v473, %v530
      %v549 = vrot.slane %v537, 4
      %v550 = vrot.slane %v539, 4
      %v551 = vsel %vm408, %v549, %v550
      %v552 = vrot.slane %v538, 4
      %v553 = vrot.slane %v540, 4
      %v554 = vsel %vm408, %v552, %v553
      %v555 = vrot.slane %v541, 4
      %v556 = vsel %vm408, %v550, %v555
      %v557 = vrot.slane %v542, 4
      %v558 = vsel %vm408, %v553, %v557
      %565 = vxpose.xlu0.b32.start [1/16] %v551, 128
      %566 = vxpose.xlu0.b32.cont [2/16] %v556, 128
      %567 = vxpose.xlu0.b32.cont [3/16] %v555, 128
      %568 = vxpose.xlu0.b32.cont [4/16] 0.0, 128
      %569 = vxpose.xlu0.b32.cont [5/16] 0.0, 128
      %570 = vxpose.xlu0.b32.cont [6/16] 0.0, 128
      %571 = vxpose.xlu0.b32.cont [7/16] 0.0, 128
      %572 = vxpose.xlu0.b32.cont [8/16] 0.0, 128
      %573 = vxpose.xlu0.b32.cont [9/16] 0.0, 128
      %574 = vxpose.xlu0.b32.cont [10/16] 0.0, 128
      %575 = vxpose.xlu0.b32.cont [11/16] 0.0, 128
      %576 = vxpose.xlu0.b32.cont [12/16] 0.0, 128
      %577 = vxpose.xlu0.b32.cont [13/16] 0.0, 128
      %578 = vxpose.xlu0.b32.cont [14/16] 0.0, 128
      %579 = vxpose.xlu0.b32.cont [15/16] 0.0, 128
      %580 = vxpose.xlu0.b32.end [16/16] 0.0, 128
      %v581 = vpop.trf.xlu0
      %v582 = vpop.trf.xlu0
      %v583 = vpop.trf.xlu0
      %v584 = vpop.trf.xlu0
      %v585 = vpop.trf.xlu0
      %v586 = vpop.trf.xlu0
      %v587 = vpop.trf.xlu0
      %v588 = vpop.trf.xlu0
      %v589 = vpop.trf.xlu0
      %v590 = vpop.trf.xlu0
      %v591 = vpop.trf.xlu0
      %v592 = vpop.trf.xlu0
      %v593 = vpop.trf.xlu0
      %v594 = vpop.trf.xlu0
      %v595 = vpop.trf.xlu0
      %v596 = vpop.trf.xlu0
      %597 = vxpose.xlu0.b32.start [1/16] %v554, 128
      %598 = vxpose.xlu0.b32.cont [2/16] %v558, 128
      %599 = vxpose.xlu0.b32.cont [3/16] %v557, 128
      %600 = vxpose.xlu0.b32.cont [4/16] 0.0, 128
      %601 = vxpose.xlu0.b32.cont [5/16] 0.0, 128
      %602 = vxpose.xlu0.b32.cont [6/16] 0.0, 128
      %603 = vxpose.xlu0.b32.cont [7/16] 0.0, 128
      %604 = vxpose.xlu0.b32.cont [8/16] 0.0, 128
      %605 = vxpose.xlu0.b32.cont [9/16] 0.0, 128
      %606 = vxpose.xlu0.b32.cont [10/16] 0.0, 128
      %607 = vxpose.xlu0.b32.cont [11/16] 0.0, 128
      %608 = vxpose.xlu0.b32.cont [12/16] 0.0, 128
      %609 = vxpose.xlu0.b32.cont [13/16] 0.0, 128
      %610 = vxpose.xlu0.b32.cont [14/16] 0.0, 128
      %611 = vxpose.xlu0.b32.cont [15/16] 0.0, 128
      %612 = vxpose.xlu0.b32.end [16/16] 0.0, 128
      %v613 = vpop.trf.xlu0
      %v614 = vpop.trf.xlu0
      %v615 = vpop.trf.xlu0
      %v616 = vpop.trf.xlu0
      %v617 = vpop.trf.xlu0
      %v618 = vpop.trf.xlu0
      %v619 = vpop.trf.xlu0
      %v620 = vpop.trf.xlu0
      %v621 = vpop.trf.xlu0
      %v622 = vpop.trf.xlu0
      %v623 = vpop.trf.xlu0
      %v624 = vpop.trf.xlu0
      %v625 = vpop.trf.xlu0
      %v626 = vpop.trf.xlu0
      %v627 = vpop.trf.xlu0
      %v628 = vpop.trf.xlu0
      %v645 = vrot.slane %v581, 2
      %v646 = vrot.slane %v581, 4
      %v647 = vrot.slane %v581, 6
      %v648 = vrot.slane %v582, 2
      %v649 = vrot.slane %v582, 4
      %v650 = vrot.slane %v582, 6
      %v651 = vrot.slane %v585, 2
      %v652 = vrot.slane %v585, 4
      %v653 = vrot.slane %v585, 6
      %v654 = vrot.slane %v586, 2
      %v655 = vrot.slane %v586, 4
      %v656 = vrot.slane %v586, 6
      %v657 = vrot.slane %v589, 2
      %v658 = vrot.slane %v589, 4
      %v659 = vrot.slane %v589, 6
      %v660 = vrot.slane %v590, 2
      %v661 = vrot.slane %v590, 4
      %v662 = vrot.slane %v590, 6
      %v663 = vrot.slane %v593, 2
      %v664 = vrot.slane %v593, 4
      %v665 = vrot.slane %v593, 6
      %v666 = vrot.slane %v594, 2
      %v667 = vrot.slane %v594, 4
      %v668 = vrot.slane %v594, 6
      %v669 = vrot.slane %v613, 2
      %v670 = vrot.slane %v613, 4
      %v671 = vrot.slane %v613, 6
      %v672 = vrot.slane %v614, 2
      %v673 = vrot.slane %v614, 4
      %v674 = vrot.slane %v614, 6
      %v675 = vrot.slane %v617, 2
      %v676 = vrot.slane %v617, 4
      %v677 = vrot.slane %v617, 6
      %v678 = vrot.slane %v618, 2
      %v679 = vrot.slane %v618, 4
      %v680 = vrot.slane %v618, 6
      %v681 = vrot.slane %v621, 2
      %v682 = vrot.slane %v621, 4
      %v683 = vrot.slane %v621, 6
      %v684 = vrot.slane %v622, 2
      %v685 = vrot.slane %v622, 4
      %v686 = vrot.slane %v622, 6
      %v687 = vrot.slane %v625, 2
      %v688 = vrot.slane %v625, 4
      %v689 = vrot.slane %v625, 6
      %v690 = vrot.slane %v626, 2
      %v691 = vrot.slane %v626, 4
      %v692 = vrot.slane %v626, 6
      %v741 = vpack.c.bf16 %v581, %v581
      %v742 = vpack.c.bf16 %v645, %v645
      %v743 = vpack.c.bf16 %v646, %v646
      %v744 = vpack.c.bf16 %v647, %v647
      %v745 = vpack.c.bf16 %v582, %v582
      %v746 = vpack.c.bf16 %v648, %v648
      %v747 = vpack.c.bf16 %v649, %v649
      %v748 = vpack.c.bf16 %v650, %v650
      %v749 = vpack.c.bf16 %v585, %v585
      %v750 = vpack.c.bf16 %v651, %v651
      %v751 = vpack.c.bf16 %v652, %v652
      %v752 = vpack.c.bf16 %v653, %v653
      %v753 = vpack.c.bf16 %v586, %v586
      %v754 = vpack.c.bf16 %v654, %v654
      %v755 = vpack.c.bf16 %v655, %v655
      %v756 = vpack.c.bf16 %v656, %v656
      %v757 = vpack.c.bf16 %v589, %v589
      %v758 = vpack.c.bf16 %v657, %v657
      %v759 = vpack.c.bf16 %v658, %v658
      %v760 = vpack.c.bf16 %v659, %v659
      %v761 = vpack.c.bf16 %v590, %v590
      %v762 = vpack.c.bf16 %v660, %v660
      %v763 = vpack.c.bf16 %v661, %v661
      %v764 = vpack.c.bf16 %v662, %v662
      %v765 = vpack.c.bf16 %v593, %v593
      %v766 = vpack.c.bf16 %v663, %v663
      %v767 = vpack.c.bf16 %v664, %v664
      %v768 = vpack.c.bf16 %v665, %v665
      %v769 = vpack.c.bf16 %v594, %v594
      %v770 = vpack.c.bf16 %v666, %v666
      %v771 = vpack.c.bf16 %v667, %v667
      %v772 = vpack.c.bf16 %v668, %v668
      %v773 = vpack.c.bf16 %v613, %v613
      %v774 = vpack.c.bf16 %v669, %v669
      %v775 = vpack.c.bf16 %v670, %v670
      %v776 = vpack.c.bf16 %v671, %v671
      %v777 = vpack.c.bf16 %v614, %v614
      %v778 = vpack.c.bf16 %v672, %v672
      %v779 = vpack.c.bf16 %v673, %v673
      %v780 = vpack.c.bf16 %v674, %v674
      %v781 = vpack.c.bf16 %v617, %v617
      %v782 = vpack.c.bf16 %v675, %v675
      %v783 = vpack.c.bf16 %v676, %v676
      %v784 = vpack.c.bf16 %v677, %v677
      %v785 = vpack.c.bf16 %v618, %v618
      %v786 = vpack.c.bf16 %v678, %v678
      %v787 = vpack.c.bf16 %v679, %v679
      %v788 = vpack.c.bf16 %v680, %v680
      %v789 = vpack.c.bf16 %v621, %v621
      %v790 = vpack.c.bf16 %v681, %v681
      %v791 = vpack.c.bf16 %v682, %v682
      %v792 = vpack.c.bf16 %v683, %v683
      %v793 = vpack.c.bf16 %v622, %v622
      %v794 = vpack.c.bf16 %v684, %v684
      %v795 = vpack.c.bf16 %v685, %v685
      %v796 = vpack.c.bf16 %v686, %v686
      %v797 = vpack.c.bf16 %v625, %v625
      %v798 = vpack.c.bf16 %v687, %v687
      %v799 = vpack.c.bf16 %v688, %v688
      %v800 = vpack.c.bf16 %v689, %v689
      %v801 = vpack.c.bf16 %v626, %v626
      %v802 = vpack.c.bf16 %v690, %v690
      %v803 = vpack.c.bf16 %v691, %v691
      %v804 = vpack.c.bf16 %v692, %v692
      %v869 = vunpack.c.l.b16 %v741
      %v870 = vunpack.c.l.b16 %v742
      %v871 = vunpack.c.l.b16 %v743
      %v872 = vunpack.c.l.b16 %v744
      %v873 = vunpack.c.l.b16 %v745
      %v874 = vunpack.c.l.b16 %v746
      %v875 = vunpack.c.l.b16 %v747
      %v876 = vunpack.c.l.b16 %v748
      %v877 = vunpack.c.l.b16 %v749
      %v878 = vunpack.c.l.b16 %v750
      %v879 = vunpack.c.l.b16 %v751
      %v880 = vunpack.c.l.b16 %v752
      %v881 = vunpack.c.l.b16 %v753
      %v882 = vunpack.c.l.b16 %v754
      %v883 = vunpack.c.l.b16 %v755
      %v884 = vunpack.c.l.b16 %v756
      %v885 = vunpack.c.l.b16 %v757
      %v886 = vunpack.c.l.b16 %v758
      %v887 = vunpack.c.l.b16 %v759
      %v888 = vunpack.c.l.b16 %v760
      %v889 = vunpack.c.l.b16 %v761
      %v890 = vunpack.c.l.b16 %v762
      %v891 = vunpack.c.l.b16 %v763
      %v892 = vunpack.c.l.b16 %v764
      %v893 = vunpack.c.l.b16 %v765
      %v894 = vunpack.c.l.b16 %v766
      %v895 = vunpack.c.l.b16 %v767
      %v896 = vunpack.c.l.b16 %v768
      %v897 = vunpack.c.l.b16 %v769
      %v898 = vunpack.c.l.b16 %v770
      %v899 = vunpack.c.l.b16 %v771
      %v900 = vunpack.c.l.b16 %v772
      %v901 = vunpack.c.l.b16 %v773
      %v902 = vunpack.c.l.b16 %v774
      %v903 = vunpack.c.l.b16 %v775
      %v904 = vunpack.c.l.b16 %v776
      %v905 = vunpack.c.l.b16 %v777
      %v906 = vunpack.c.l.b16 %v778
      %v907 = vunpack.c.l.b16 %v779
      %v908 = vunpack.c.l.b16 %v780
      %v909 = vunpack.c.l.b16 %v781
      %v910 = vunpack.c.l.b16 %v782
      %v911 = vunpack.c.l.b16 %v783
      %v912 = vunpack.c.l.b16 %v784
      %v913 = vunpack.c.l.b16 %v785
      %v914 = vunpack.c.l.b16 %v786
      %v915 = vunpack.c.l.b16 %v787
      %v916 = vunpack.c.l.b16 %v788
      %v917 = vunpack.c.l.b16 %v789
      %v918 = vunpack.c.l.b16 %v790
      %v919 = vunpack.c.l.b16 %v791
      %v920 = vunpack.c.l.b16 %v792
      %v921 = vunpack.c.l.b16 %v793
      %v922 = vunpack.c.l.b16 %v794
      %v923 = vunpack.c.l.b16 %v795
      %v924 = vunpack.c.l.b16 %v796
      %v925 = vunpack.c.l.b16 %v797
      %v926 = vunpack.c.l.b16 %v798
      %v927 = vunpack.c.l.b16 %v799
      %v928 = vunpack.c.l.b16 %v800
      %v929 = vunpack.c.l.b16 %v801
      %v930 = vunpack.c.l.b16 %v802
      %v931 = vunpack.c.l.b16 %v803
      %v932 = vunpack.c.l.b16 %v804
      %v933 = vrot.slane %v870, 7
      %vm934 = vcmask 1041409
      %v935 = vsel %vm934, %v933, %v869
      %v936 = vrot.slane %v871, 6
      %vm937 = vcmask 1042434
      %v938 = vsel %vm937, %v936, %v935
      %v939 = vrot.slane %v872, 5
      %vm940 = vcmask 1043459
      %v941 = vsel %vm940, %v939, %v938
      %v942 = vrot.slane %v873, 4
      %vm943 = vcmask 1044484
      %v944 = vsel %vm943, %v942, %v941
      %v945 = vrot.slane %v874, 3
      %vm946 = vcmask 1045509
      %v947 = vsel %vm946, %v945, %v944
      %v948 = vrot.slane %v875, 2
      %vm949 = vcmask 1046534
      %v950 = vsel %vm949, %v948, %v947
      %v951 = vrot.slane %v876, 1
      %vm952 = vcmask 1047559
      %v953 = vsel %vm952, %v951, %v950
      %v954 = vrot.slane %v878, 7
      %v955 = vsel %vm934, %v954, %v877
      %v956 = vrot.slane %v879, 6
      %v957 = vsel %vm937, %v956, %v955
      %v958 = vrot.slane %v880, 5
      %v959 = vsel %vm940, %v958, %v957
      %v960 = vrot.slane %v881, 4
      %v961 = vsel %vm943, %v960, %v959
      %v962 = vrot.slane %v882, 3
      %v963 = vsel %vm946, %v962, %v961
      %v964 = vrot.slane %v883, 2
      %v965 = vsel %vm949, %v964, %v963
      %v966 = vrot.slane %v884, 1
      %v967 = vsel %vm952, %v966, %v965
      %v968 = vrot.slane %v886, 7
      %v969 = vsel %vm934, %v968, %v885
      %v970 = vrot.slane %v887, 6
      %v971 = vsel %vm937, %v970, %v969
      %v972 = vrot.slane %v888, 5
      %v973 = vsel %vm940, %v972, %v971
      %v974 = vrot.slane %v889, 4
      %v975 = vsel %vm943, %v974, %v973
      %v976 = vrot.slane %v890, 3
      %v977 = vsel %vm946, %v976, %v975
      %v978 = vrot.slane %v891, 2
      %v979 = vsel %vm949, %v978, %v977
      %v980 = vrot.slane %v892, 1
      %v981 = vsel %vm952, %v980, %v979
      %v982 = vrot.slane %v894, 7
      %v983 = vsel %vm934, %v982, %v893
      %v984 = vrot.slane %v895, 6
      %v985 = vsel %vm937, %v984, %v983
      %v986 = vrot.slane %v896, 5
      %v987 = vsel %vm940, %v986, %v985
      %v988 = vrot.slane %v897, 4
      %v989 = vsel %vm943, %v988, %v987
      %v990 = vrot.slane %v898, 3
      %v991 = vsel %vm946, %v990, %v989
      %v992 = vrot.slane %v899, 2
      %v993 = vsel %vm949, %v992, %v991
      %v994 = vrot.slane %v900, 1
      %v995 = vsel %vm952, %v994, %v993
      %v996 = vrot.slane %v902, 7
      %v997 = vsel %vm934, %v996, %v901
      %v998 = vrot.slane %v903, 6
      %v999 = vsel %vm937, %v998, %v997
      %v1000 = vrot.slane %v904, 5
      %v1001 = vsel %vm940, %v1000, %v999
      %v1002 = vrot.slane %v905, 4
      %v1003 = vsel %vm943, %v1002, %v1001
      %v1004 = vrot.slane %v906, 3
      %v1005 = vsel %vm946, %v1004, %v1003
      %v1006 = vrot.slane %v907, 2
      %v1007 = vsel %vm949, %v1006, %v1005
      %v1008 = vrot.slane %v908, 1
      %v1009 = vsel %vm952, %v1008, %v1007
      %v1010 = vrot.slane %v910, 7
      %v1011 = vsel %vm934, %v1010, %v909
      %v1012 = vrot.slane %v911, 6
      %v1013 = vsel %vm937, %v1012, %v1011
      %v1014 = vrot.slane %v912, 5
      %v1015 = vsel %vm940, %v1014, %v1013
      %v1016 = vrot.slane %v913, 4
      %v1017 = vsel %vm943, %v1016, %v1015
      %v1018 = vrot.slane %v914, 3
      %v1019 = vsel %vm946, %v1018, %v1017
      %v1020 = vrot.slane %v915, 2
      %v1021 = vsel %vm949, %v1020, %v1019
      %v1022 = vrot.slane %v916, 1
      %v1023 = vsel %vm952, %v1022, %v1021
      %v1024 = vrot.slane %v918, 7
      %v1025 = vsel %vm934, %v1024, %v917
      %v1026 = vrot.slane %v919, 6
      %v1027 = vsel %vm937, %v1026, %v1025
      %v1028 = vrot.slane %v920, 5
      %v1029 = vsel %vm940, %v1028, %v1027
      %v1030 = vrot.slane %v921, 4
      %v1031 = vsel %vm943, %v1030, %v1029
      %v1032 = vrot.slane %v922, 3
      %v1033 = vsel %vm946, %v1032, %v1031
      %v1034 = vrot.slane %v923, 2
      %v1035 = vsel %vm949, %v1034, %v1033
      %v1036 = vrot.slane %v924, 1
      %v1037 = vsel %vm952, %v1036, %v1035
      %v1038 = vrot.slane %v926, 7
      %v1039 = vsel %vm934, %v1038, %v925
      %v1040 = vrot.slane %v927, 6
      %v1041 = vsel %vm937, %v1040, %v1039
      %v1042 = vrot.slane %v928, 5
      %v1043 = vsel %vm940, %v1042, %v1041
      %v1044 = vrot.slane %v929, 4
      %v1045 = vsel %vm943, %v1044, %v1043
      %v1046 = vrot.slane %v930, 3
      %v1047 = vsel %vm946, %v1046, %v1045
      %v1048 = vrot.slane %v931, 2
      %v1049 = vsel %vm949, %v1048, %v1047
      %v1050 = vrot.slane %v932, 1
      %v1051 = vsel %vm952, %v1050, %v1049
      %v1052 = vpack.c.b16 %v953, %v953
      %v1053 = vpack.c.b16 %v967, %v967
      %v1054 = vpack.c.b16 %v981, %v981
      %v1055 = vpack.c.b16 %v995, %v995
      %v1056 = vpack.c.b16 %v1009, %v1009
      %v1057 = vpack.c.b16 %v1023, %v1023
      %v1058 = vpack.c.b16 %v1037, %v1037
      %v1059 = vpack.c.b16 %v1051, %v1051
      %vm1068 = vcmask 27648
      %1069 = vst.msk [vmem:[%s298] sm:$0xf] %vm1068, %v1052
      %1070 = vst.msk [vmem:[%s298 + $0x4] sm:$0xf] %vm1068, %v1053
      %1071 = vst.msk [vmem:[%s298 + $0x8] sm:$0xf] %vm1068, %v1054
      %1072 = vst.msk [vmem:[%s298 + $0xc] sm:$0xf] %vm1068, %v1055
      %1073 = vst.msk [vmem:[%s298 + $0x10] sm:$0xf] %vm1068, %v1056
      %1074 = vst.msk [vmem:[%s298 + $0x14] sm:$0xf] %vm1068, %v1057
      %1075 = vst.msk [vmem:[%s298 + $0x18] sm:$0xf] %vm1068, %v1058
      %1076 = vst.msk [vmem:[%s298 + $0x1c] sm:$0xf] %vm1068, %v1059
      %v1077 = vperm.slane %v581, 0
      %v1078 = vperm.slane %v645, 0
      %v1079 = vperm.slane %v646, 0
      %v1080 = vperm.slane %v647, 0
      %v1081 = vperm.slane %v582, 0
      %v1082 = vperm.slane %v648, 0
      %v1083 = vperm.slane %v649, 0
      %v1084 = vperm.slane %v650, 0
      %v1085 = vperm.slane %v585, 0
      %v1086 = vperm.slane %v651, 0
      %v1087 = vperm.slane %v652, 0
      %v1088 = vperm.slane %v653, 0
      %v1089 = vperm.slane %v586, 0
      %v1090 = vperm.slane %v654, 0
      %v1091 = vperm.slane %v655, 0
      %v1092 = vperm.slane %v656, 0
      %v1093 = vperm.slane %v589, 0
      %v1094 = vperm.slane %v657, 0
      %v1095 = vperm.slane %v658, 0
      %v1096 = vperm.slane %v659, 0
      %v1097 = vperm.slane %v590, 0
      %v1098 = vperm.slane %v660, 0
      %v1099 = vperm.slane %v661, 0
      %v1100 = vperm.slane %v662, 0
      %v1101 = vperm.slane %v593, 0
      %v1102 = vperm.slane %v663, 0
      %v1103 = vperm.slane %v664, 0
      %v1104 = vperm.slane %v665, 0
      %v1105 = vperm.slane %v594, 0
      %v1106 = vperm.slane %v666, 0
      %v1107 = vperm.slane %v667, 0
      %v1108 = vperm.slane %v668, 0
      %v1109 = vperm.slane %v613, 0
      %v1110 = vperm.slane %v669, 0
      %v1111 = vperm.slane %v670, 0
      %v1112 = vperm.slane %v671, 0
      %v1113 = vperm.slane %v614, 0
      %v1114 = vperm.slane %v672, 0
      %v1115 = vperm.slane %v673, 0
      %v1116 = vperm.slane %v674, 0
      %v1117 = vperm.slane %v617, 0
      %v1118 = vperm.slane %v675, 0
      %v1119 = vperm.slane %v676, 0
      %v1120 = vperm.slane %v677, 0
      %v1121 = vperm.slane %v618, 0
      %v1122 = vperm.slane %v678, 0
      %v1123 = vperm.slane %v679, 0
      %v1124 = vperm.slane %v680, 0
      %v1125 = vperm.slane %v621, 0
      %v1126 = vperm.slane %v681, 0
      %v1127 = vperm.slane %v682, 0
      %v1128 = vperm.slane %v683, 0
      %v1129 = vperm.slane %v622, 0
      %v1130 = vperm.slane %v684, 0
      %v1131 = vperm.slane %v685, 0
      %v1132 = vperm.slane %v686, 0
      %v1133 = vperm.slane %v625, 0
      %v1134 = vperm.slane %v687, 0
      %v1135 = vperm.slane %v688, 0
      %v1136 = vperm.slane %v689, 0
      %v1137 = vperm.slane %v626, 0
      %v1138 = vperm.slane %v690, 0
      %v1139 = vperm.slane %v691, 0
      %v1140 = vperm.slane %v692, 0
      %v1141 = vsel %vm934, %v1078, %v1077
      %v1142 = vsel %vm937, %v1079, %v1141
      %v1143 = vsel %vm940, %v1080, %v1142
      %v1144 = vsel %vm943, %v1081, %v1143
      %v1145 = vsel %vm946, %v1082, %v1144
      %v1146 = vsel %vm949, %v1083, %v1145
      %v1147 = vsel %vm952, %v1084, %v1146
      %v1148 = vsel %vm934, %v1086, %v1085
      %v1149 = vsel %vm937, %v1087, %v1148
      %v1150 = vsel %vm940, %v1088, %v1149
      %v1151 = vsel %vm943, %v1089, %v1150
      %v1152 = vsel %vm946, %v1090, %v1151
      %v1153 = vsel %vm949, %v1091, %v1152
      %v1154 = vsel %vm952, %v1092, %v1153
      %v1155 = vsel %vm934, %v1094, %v1093
      %v1156 = vsel %vm937, %v1095, %v1155
      %v1157 = vsel %vm940, %v1096, %v1156
      %v1158 = vsel %vm943, %v1097, %v1157
      %v1159 = vsel %vm946, %v1098, %v1158
      %v1160 = vsel %vm949, %v1099, %v1159
      %v1161 = vsel %vm952, %v1100, %v1160
      %v1162 = vsel %vm934, %v1102, %v1101
      %v1163 = vsel %vm937, %v1103, %v1162
      %v1164 = vsel %vm940, %v1104, %v1163
      %v1165 = vsel %vm943, %v1105, %v1164
      %v1166 = vsel %vm946, %v1106, %v1165
      %v1167 = vsel %vm949, %v1107, %v1166
      %v1168 = vsel %vm952, %v1108, %v1167
      %v1169 = vsel %vm934, %v1110, %v1109
      %v1170 = vsel %vm937, %v1111, %v1169
      %v1171 = vsel %vm940, %v1112, %v1170
      %v1172 = vsel %vm943, %v1113, %v1171
      %v1173 = vsel %vm946, %v1114, %v1172
      %v1174 = vsel %vm949, %v1115, %v1173
      %v1175 = vsel %vm952, %v1116, %v1174
      %v1176 = vsel %vm934, %v1118, %v1117
      %v1177 = vsel %vm937, %v1119, %v1176
      %v1178 = vsel %vm940, %v1120, %v1177
      %v1179 = vsel %vm943, %v1121, %v1178
      %v1180 = vsel %vm946, %v1122, %v1179
      %v1181 = vsel %vm949, %v1123, %v1180
      %v1182 = vsel %vm952, %v1124, %v1181
      %v1183 = vsel %vm934, %v1126, %v1125
      %v1184 = vsel %vm937, %v1127, %v1183
      %v1185 = vsel %vm940, %v1128, %v1184
      %v1186 = vsel %vm943, %v1129, %v1185
      %v1187 = vsel %vm946, %v1130, %v1186
      %v1188 = vsel %vm949, %v1131, %v1187
      %v1189 = vsel %vm952, %v1132, %v1188
      %v1190 = vsel %vm934, %v1134, %v1133
      %v1191 = vsel %vm937, %v1135, %v1190
      %v1192 = vsel %vm940, %v1136, %v1191
      %v1193 = vsel %vm943, %v1137, %v1192
      %v1194 = vsel %vm946, %v1138, %v1193
      %v1195 = vsel %vm949, %v1139, %v1194
      %v1196 = vsel %vm952, %v1140, %v1195
      %1197 = vrot.lane.b32.xlu0 %v1147, 124
      %v1198 = vpop.permute.xlu0 %1197
      %1199 = vrot.lane.b32.xlu0 %v1154, 124
      %v1200 = vpop.permute.xlu0 %1199
      %1201 = vrot.lane.b32.xlu0 %v1161, 124
      %v1202 = vpop.permute.xlu0 %1201
      %1203 = vrot.lane.b32.xlu0 %v1168, 124
      %v1204 = vpop.permute.xlu0 %1203
      %1205 = vrot.lane.b32.xlu0 %v1175, 124
      %v1206 = vpop.permute.xlu0 %1205
      %1207 = vrot.lane.b32.xlu0 %v1182, 124
      %v1208 = vpop.permute.xlu0 %1207
      %1209 = vrot.lane.b32.xlu0 %v1189, 124
      %v1210 = vpop.permute.xlu0 %1209
      %1211 = vrot.lane.b32.xlu0 %v1196, 124
      %v1212 = vpop.permute.xlu0 %1211
      %1221 = vxpose.xlu0.b32.start [1/16] %v1198, 128
      %1222 = vxpose.xlu0.b32.cont [2/16] %v1200, 128
      %1223 = vxpose.xlu0.b32.cont [3/16] %v1202, 128
      %1224 = vxpose.xlu0.b32.cont [4/16] %v1204, 128
      %1225 = vxpose.xlu0.b32.cont [5/16] %v1206, 128
      %1226 = vxpose.xlu0.b32.cont [6/16] %v1208, 128
      %1227 = vxpose.xlu0.b32.cont [7/16] %v1210, 128
      %1228 = vxpose.xlu0.b32.cont [8/16] %v1212, 128
      %1229 = vxpose.xlu0.b32.cont [9/16] 0.0, 128
      %1230 = vxpose.xlu0.b32.cont [10/16] 0.0, 128
      %1231 = vxpose.xlu0.b32.cont [11/16] 0.0, 128
      %1232 = vxpose.xlu0.b32.cont [12/16] 0.0, 128
      %1233 = vxpose.xlu0.b32.cont [13/16] 0.0, 128
      %1234 = vxpose.xlu0.b32.cont [14/16] 0.0, 128
      %1235 = vxpose.xlu0.b32.cont [15/16] 0.0, 128
      %1236 = vxpose.xlu0.b32.end [16/16] 0.0, 128
      %v1237 = vpop.trf.xlu0
      %v1238 = vpop.trf.xlu0
      %v1239 = vpop.trf.xlu0
      %v1240 = vpop.trf.xlu0
      %v1241 = vpop.trf.xlu0
      %v1242 = vpop.trf.xlu0
      %v1243 = vpop.trf.xlu0
      %v1244 = vpop.trf.xlu0
      %v1245 = vpop.trf.xlu0
      %v1246 = vpop.trf.xlu0
      %v1247 = vpop.trf.xlu0
      %v1248 = vpop.trf.xlu0
      %v1249 = vpop.trf.xlu0
      %v1250 = vpop.trf.xlu0
      %v1251 = vpop.trf.xlu0
      %v1252 = vpop.trf.xlu0
      %v1253 = vpack.c.bf16 %v1237, %v1237
      %v1254 = vpack.c.bf16 %v1238, %v1238
      %vm1255 = vcmask 519168
      %1256 = vst.msk [vmem:[%s307] sm:$0xf] %vm1255, %v1253
      %1257 = vst.msk [vmem:[%s307 + $0x4] sm:$0xf] %vm1255, %v1254
      %s1258 = smul.u32 2, %s22
      %p1259 = scmp.lt.s32.totalorder %s21, 1
      %s1260 = scalar_select %p1259, %s21, 1
      %p1261 = scmp.lt.s32.totalorder %s1258, 1
      %s1262 = scalar_select %p1261, %s1258, 1
      %s1263 = smul.addr %s1260, 2
      %s1264 = sadd.s32 %s1262, %s1263
      %s1265 = smul.addr %s1264, 2
      %s1266 = scalar_lea.vmem %s3, %s1265
      %s1267 = smul.u32 8, %s22
      %p1268 = scmp.lt.s32.totalorder %s21, 1
      %s1269 = scalar_select %p1268, %s21, 1
      %p1270 = scmp.lt.s32.totalorder %s1267, 7
      %s1271 = scalar_select %p1270, %s1267, 7
      %s1272 = smul.addr %s1269, 8
      %s1273 = sadd.s32 %s1271, %s1272
      %s1274 = smul.addr %s1273, 4
      %s1275 = scalar_lea.vmem %s4, %s1274
      %p1276 = scmp.lt.s32.totalorder %s21, 1
      %s1277 = scalar_select %p1276, %s21, 1
      %p1278 = scmp.lt.s32.totalorder %s22, 0
      %s1279 = scalar_select %p1278, %s22, 0
      %s1280 = smul.addr %s1277, 2
      %s1281 = sadd.s32 %s1279, %s1280
      %s1282 = smul.addr %s1281, 4
      %s1283 = scalar_lea.vmem %s5, %s1282
      // Predicated region
      $region33: #{attention_forward.2} parent=31 // pred_check
        %p1284 = pneg %p119
      $region34: #{attention_forward.2} parent=31 // pred_check_branch
        %1286 = sbr.rel (%p1284) target = $region36
      $region35: #{attention_forward.2} parent=31 // pred_region
        %s1287 = smul.u32 2, %s22
      $region36: #{attention_forward.2} parent=31 // pred_fallthru
        _
      // Predicated region
      $region37: #{attention_forward.2} parent=31 // pred_check
        %p1288 = pneg %p147
      $region38: #{attention_forward.2} parent=31 // pred_check_branch
        %1290 = sbr.rel (%p1288) target = $region40
      $region39: #{attention_forward.2} parent=31 // pred_region
        %s1291 = smul.u32 8, %s22
      $region40: #{attention_forward.2} parent=31 // pred_fallthru
        _
      // Predicated region
      $region41: #{attention_forward.2} parent=31 // pred_check
        %p1292 = pneg %p175
      $region42: #{attention_forward.2} parent=31 // pred_check_branch
        %1294 = sbr.rel (%p1292) target = $region44
      $region43: #{attention_forward.2} parent=31 // pred_region
        _
      $region44: #{attention_forward.2} parent=31 // pred_fallthru
        _
    $region32: #{attention_forward.2} parent=5 // pred_fallthru
      _
    %p1295 = scmp.le.s32.totalorder 2, %s12
    // Predicated region
    $region45: #{attention_forward.2} parent=5 // pred_check
      %p1296 = pneg %p1295
    $region46: #{attention_forward.2} parent=5 // pred_check_branch
      %1298 = sbr.rel (%p1296) target = $region48
    $region47: #{attention_forward.2} parent=5 // pred_region
      %s1299 = ssub.s32 %s12, 2
      // Predicated region
      $region49: #{attention_forward.2} parent=47 // pred_check
        %p1300 = pneg %p125
      $region50: #{attention_forward.2} parent=47 // pred_check_branch
        %1302 = sbr.rel (%p1300) target = $region52
      $region51: #{attention_forward.2} parent=47 // pred_region
        %s1303 = smul.u32 2, %s24
        %p1304 = scmp.lt.s32.totalorder %s23, 1
        %s1305 = scalar_select %p1304, %s23, 1
        %p1306 = scmp.lt.s32.totalorder %s1303, 1
        %s1307 = scalar_select %p1306, %s1303, 1
        %s1308 = smul.addr %s1305, 2
        %s1309 = sadd.s32 %s1307, %s1308
        %s1310 = smul.addr %s1309, 2
        %s1311 = scalar_lea.vmem %s3, %s1310
      $region52: #{attention_forward.2} parent=47 // pred_fallthru
        _
      // Predicated region
      $region53: #{attention_forward.2} parent=47 // pred_check
        %p1312 = pneg %p153
      $region54: #{attention_forward.2} parent=47 // pred_check_branch
        %1314 = sbr.rel (%p1312) target = $region56
      $region55: #{attention_forward.2} parent=47 // pred_region
        %s1315 = smul.u32 8, %s24
        %p1316 = scmp.lt.s32.totalorder %s23, 1
        %s1317 = scalar_select %p1316, %s23, 1
        %p1318 = scmp.lt.s32.totalorder %s1315, 7
        %s1319 = scalar_select %p1318, %s1315, 7
        %s1320 = smul.addr %s1317, 8
        %s1321 = sadd.s32 %s1319, %s1320
        %s1322 = smul.addr %s1321, 4
        %s1323 = scalar_lea.vmem %s4, %s1322
      $region56: #{attention_forward.2} parent=47 // pred_fallthru
        _
      // Predicated region
      $region57: #{attention_forward.2} parent=47 // pred_check
        %p1324 = pneg %p181
      $region58: #{attention_forward.2} parent=47 // pred_check_branch
        %1326 = sbr.rel (%p1324) target = $region60
      $region59: #{attention_forward.2} parent=47 // pred_region
        %p1327 = scmp.lt.s32.totalorder %s23, 1
        %s1328 = scalar_select %p1327, %s23, 1
        %p1329 = scmp.lt.s32.totalorder %s24, 0
        %s1330 = scalar_select %p1329, %s24, 0
        %s1331 = smul.addr %s1328, 2
        %s1332 = sadd.s32 %s1330, %s1331
        %s1333 = smul.addr %s1332, 4
        %s1334 = scalar_lea.vmem %s5, %s1333
      $region60: #{attention_forward.2} parent=47 // pred_fallthru
        _
    $region48: #{attention_forward.2} parent=5 // pred_fallthru
      _
  $region6: #{attention_forward.2} parent=0 // loop_footer
    %s16 = sadd.s32 1, %s12
  $region7: #{attention_forward.2} parent=0 // loop_footer_branch
    %11 = sbr.rel target = $region3
  $region8: #{attention_forward.2} parent=0 // loop_exit
    _

</llo_original>
